<compile_context>
chip_gen: v7x
topology: tpu7x:2x2x1
jax: 0.10.0
libtpu: 0.0.40
codegen_flags: <defaults>
</compile_context>

<pallas_src>
import functools

import jax
import jax.numpy as jnp
from jax.experimental import pallas as pl
from jax.experimental.pallas import tpu as pltpu

LAYER_DIMS = [100, 256, 128, 64, 32, 16, 10]
NUM_LAYERS = len(LAYER_DIMS) - 1
NEG_SLOPE = 0.01           # nn.LeakyReLU default negative_slope

PAD_IN = 128               # input features 100 -> 128 lanes
PAD_MID = 128              # layers 1..5 outputs padded to 128 lanes
PAD_L0_OUT = 256           # layer 0 real d_out


def mlp_kernel(x_ref, w0_ref, w1_ref, wr_ref, b_ref, o_ref):
    """Fused 6-layer MLP. bf16 MXU operands, f32 accumulate / VPU activations.

    x_ref : (tile_b, 128) f32   input, lanes 100:128 are zero
    w0_ref: (128, 256)    bf16  layer-0 weight (rows 100:128 zero)
    w1_ref: (256, 128)    bf16  layer-1 weight
    wr_ref: (4, 128, 128) bf16  layers 2..5 weights, zero padded
    b_ref : (6, 256)      f32   biases, zero padded
    o_ref : (tile_b, 128) f32   output, real result in lanes 0:10

    Padded lanes stay exactly 0 through every layer (zero weights, zero bias,
    LeakyReLU(0)=0), so slicing [:, :10] afterwards recovers the exact result.
    """
    def act(y):                                  # LeakyReLU in f32 on the VPU
        return jnp.where(y > 0, y, NEG_SLOPE * y)

    h = x_ref[...]                                             # (tile_b, 128) f32
    # Layer 0: (tile_b,128) @ (128,256)
    y = jnp.dot(h.astype(jnp.bfloat16), w0_ref[...],
                preferred_element_type=jnp.float32) + b_ref[0:1, :]
    h = act(y)                                                 # (tile_b, 256)
    # Layer 1: (tile_b,256) @ (256,128)
    y = jnp.dot(h.astype(jnp.bfloat16), w1_ref[...],
                preferred_element_type=jnp.float32) + b_ref[1:2, :PAD_MID]
    h = act(y)                                                 # (tile_b, 128)
    # Layers 2..5: (tile_b,128) @ (128,128), statically unrolled
    for l in range(4):
        y = jnp.dot(h.astype(jnp.bfloat16), wr_ref[l],
                    preferred_element_type=jnp.float32) + b_ref[2 + l:3 + l, :PAD_MID]
        h = act(y)
    o_ref[...] = h                                  # lane-dense 128-wide store


def pack_params(params):
    """Pack once at init (NOT per forward): bf16 weights, f32 biases, zero pad."""
    (w0, b0), (w1, b1) = params[0], params[1]
    w0p = jnp.zeros((PAD_IN, PAD_L0_OUT), jnp.bfloat16)
    w0p = w0p.at[: w0.shape[0], :].set(w0.astype(jnp.bfloat16))
    w1p = w1.astype(jnp.bfloat16)                              # exactly (256, 128)
    wrest = jnp.zeros((NUM_LAYERS - 2, PAD_MID, PAD_MID), jnp.bfloat16)
    biases = jnp.zeros((NUM_LAYERS, PAD_L0_OUT), jnp.float32)
    biases = biases.at[0, : b0.shape[0]].set(b0)
    biases = biases.at[1, : b1.shape[0]].set(b1)
    for l in range(2, NUM_LAYERS):
        w, b = params[l]
        d_in, d_out = w.shape
        wrest = wrest.at[l - 2, :d_in, :d_out].set(w.astype(jnp.bfloat16))
        biases = biases.at[l, :d_out].set(b)
    return w0p, w1p, wrest, biases


@functools.partial(jax.jit, static_argnames=("tile_b",))
def mlp_forward(x, w0p, w1p, wrest, biases, *, tile_b=256):
    """x: (B, 100) f32; packed params from pack_params().

    tile_b tuning: single large tile (<=512..1024) on single-TC v5e/v6e; two or
    more parallel tiles (tile_b ~= ceil(B/2) rounded to 8) on dual-TC v7x.
    """
    B, d_in = x.shape
    assert d_in == LAYER_DIMS[0]
    assert tile_b % 8 == 0
    d_out = LAYER_DIMS[-1]

    b_pad = pl.cdiv(B, tile_b) * tile_b
    # Zero-pad batch to the tile and features to 128 lanes (fuses under jit).
    x_pad = jnp.pad(x.astype(jnp.float32), ((0, b_pad - B), (0, PAD_IN - d_in)))

    flops = 2 * b_pad * (PAD_IN * PAD_L0_OUT + PAD_L0_OUT * PAD_MID
                         + (NUM_LAYERS - 2) * PAD_MID * PAD_MID)
    bytes_accessed = (x_pad.size * 4 + b_pad * PAD_MID * 4
                      + (w0p.size + w1p.size + wrest.size) * 2
                      + biases.size * 4)
    cost = pl.CostEstimate(flops=flops, transcendentals=0,
                           bytes_accessed=bytes_accessed)

    out = pl.pallas_call(
        mlp_kernel,
        out_shape=jax.ShapeDtypeStruct((b_pad, PAD_MID), jnp.float32),
        grid=(b_pad // tile_b,),
        in_specs=[
            # batch tile of activations
            pl.BlockSpec((tile_b, PAD_IN), lambda i: (i, 0)),
            # resident parameter blocks (constant index_map -> no re-DMA)
            pl.BlockSpec((PAD_IN, PAD_L0_OUT), lambda i: (0, 0)),
            pl.BlockSpec((PAD_L0_OUT, PAD_MID), lambda i: (0, 0)),
            pl.BlockSpec((NUM_LAYERS - 2, PAD_MID, PAD_MID), lambda i: (0, 0, 0)),
            pl.BlockSpec((NUM_LAYERS, PAD_L0_OUT), lambda i: (0, 0)),
        ],
        out_specs=pl.BlockSpec((tile_b, PAD_MID), lambda i: (i, 0)),
        compiler_params=pltpu.CompilerParams(
            dimension_semantics=("parallel",)),
        cost_estimate=cost,
    )(x_pad, w0p, w1p, wrest, biases)

    return out[:B, :d_out]


def init_params(key):
    """PyTorch nn.Linear default init: U(-1/sqrt(fan_in), 1/sqrt(fan_in))."""
    params = []
    for i in range(NUM_LAYERS):
        d_in, d_out = LAYER_DIMS[i], LAYER_DIMS[i + 1]
        key, kw, kb = jax.random.split(key, 3)
        bound = 1.0 / (d_in ** 0.5)
        w = jax.random.uniform(kw, (d_in, d_out), jnp.float32, -bound, bound)
        b = jax.random.uniform(kb, (d_out,), jnp.float32, -bound, bound)
        params.append((w, b))
    return params


def reference_forward(x, params, *, bf16_matmul=True):
    h = x
    for (w, b) in params:
        if bf16_matmul:
            y = jnp.dot(h.astype(jnp.bfloat16), w.astype(jnp.bfloat16),
                        preferred_element_type=jnp.float32) + b
        else:
            y = h @ w + b
        h = jnp.where(y > 0, y, NEG_SLOPE * y)
    return h


if __name__ == "__main__":
    key = jax.random.PRNGKey(0)
    key, kx = jax.random.split(key)

    # Small deterministic test: B=256 with tile_b=128 -> 2 parallel grid steps
    # (exercises the multi-step grid / both v7x TensorCores).
    B = 256
    x = jax.random.normal(kx, (B, LAYER_DIMS[0]), jnp.float32)
    params = init_params(key)

    packed = pack_params(params)          # hoisted out of the per-call hot path
    out = jax.block_until_ready(mlp_forward(x, *packed, tile_b=128))

    assert out.shape == (B, LAYER_DIMS[-1])
    # Tight check vs a bf16-operand / f32-accumulate reference (same math).
    ref_bf16 = reference_forward(x, params, bf16_matmul=True)
    assert jnp.allclose(out, ref_bf16, atol=2e-3, rtol=2e-3), float(
        jnp.max(jnp.abs(out - ref_bf16)))
    # Sanity check vs the pure-f32 PyTorch-semantics reference (bf16 tolerance).
    ref_f32 = reference_forward(x, params, bf16_matmul=False)
    assert jnp.allclose(out, ref_f32, atol=5e-2, rtol=5e-2), float(
        jnp.max(jnp.abs(out - ref_f32)))

    print("KERNEL_OK")
</pallas_src>

<mosaic_0001>
module attributes {stable_mosaic.version = 11 : i64} {
  func.func @mlp_kernel(%arg0: i32, %arg1: memref<128x128xf32, #tpu.memory_space<vmem>>, %arg2: memref<128x256xbf16, #tpu.memory_space<vmem>>, %arg3: memref<256x128xbf16, #tpu.memory_space<vmem>>, %arg4: memref<4x128x128xbf16, #tpu.memory_space<vmem>>, %arg5: memref<6x256xf32, #tpu.memory_space<vmem>>, %arg6: memref<128x128xf32, #tpu.memory_space<vmem>>) attributes {dimension_semantics = [#tpu.dimension_semantics<parallel>], iteration_bounds = array<i64: 2>, scalar_prefetch = 0 : i64, scratch_operands = 0 : i64, tpu.core_type = #tpu.core_type<tc>, window_params = [{transform_indices = @transform_0, window_bounds = array<i64: 128, 128>}, {pipeline_mode = #tpu.pipeline_mode<synchronous>, transform_indices = @transform_1, window_bounds = array<i64: 128, 256>}, {pipeline_mode = #tpu.pipeline_mode<synchronous>, transform_indices = @transform_2, window_bounds = array<i64: 256, 128>}, {pipeline_mode = #tpu.pipeline_mode<synchronous>, transform_indices = @transform_3, window_bounds = array<i64: 4, 128, 128>}, {pipeline_mode = #tpu.pipeline_mode<synchronous>, transform_indices = @transform_4, window_bounds = array<i64: 6, 256>}, {transform_indices = @transform_5, window_bounds = array<i64: 128, 128>}]} {
    %c0 = arith.constant 0 : index
    %c0_0 = arith.constant 0 : index
    %0 = vector.load %arg1[%c0, %c0_0] : memref<128x128xf32, #tpu.memory_space<vmem>>, vector<128x128xf32>
    %1 = arith.truncf %0 : vector<128x128xf32> to vector<128x128xbf16>
    %c0_1 = arith.constant 0 : index
    %c0_2 = arith.constant 0 : index
    %2 = vector.load %arg2[%c0_1, %c0_2] : memref<128x256xbf16, #tpu.memory_space<vmem>>, vector<128x256xbf16>
    %cst = arith.constant dense<0.000000e+00> : vector<128x256xf32>
    %3 = tpu.matmul %1, %2, %cst {dimension_numbers = #tpu.dot_dimension_numbers<[1], [0], [0], [1], [0, 0, 1, 1], [], []>} : vector<128x128xbf16>, vector<128x256xbf16>, vector<128x256xf32> -> vector<128x256xf32>
    %c0_3 = arith.constant 0 : index
    %c0_4 = arith.constant 0 : index
    %4 = vector.load %arg5[%c0_3, %c0_4] : memref<6x256xf32, #tpu.memory_space<vmem>>, vector<1x256xf32>
    %5 = vector.broadcast %4 : vector<1x256xf32> to vector<128x256xf32>
    %6 = arith.addf %3, %5 : vector<128x256xf32>
    %cst_5 = arith.constant 0.000000e+00 : f32
    %7 = vector.broadcast %cst_5 : f32 to vector<128x256xf32>
    %8 = arith.cmpf ogt, %6, %7 : vector<128x256xf32>
    %cst_6 = arith.constant 0.00999999977 : f32
    %9 = vector.broadcast %cst_6 : f32 to vector<128x256xf32>
    %10 = arith.mulf %9, %6 : vector<128x256xf32>
    %11 = arith.select %8, %6, %10 : vector<128x256xi1>, vector<128x256xf32>
    %12 = arith.truncf %11 : vector<128x256xf32> to vector<128x256xbf16>
    %c0_7 = arith.constant 0 : index
    %c0_8 = arith.constant 0 : index
    %13 = vector.load %arg3[%c0_7, %c0_8] : memref<256x128xbf16, #tpu.memory_space<vmem>>, vector<256x128xbf16>
    %cst_9 = arith.constant dense<0.000000e+00> : vector<128x128xf32>
    %14 = tpu.matmul %12, %13, %cst_9 {dimension_numbers = #tpu.dot_dimension_numbers<[1], [0], [0], [1], [0, 0, 1, 1], [], []>} : vector<128x256xbf16>, vector<256x128xbf16>, vector<128x128xf32> -> vector<128x128xf32>
    %c1 = arith.constant 1 : index
    %c0_10 = arith.constant 0 : index
    %15 = vector.load %arg5[%c1, %c0_10] : memref<6x256xf32, #tpu.memory_space<vmem>>, vector<1x128xf32>
    %16 = vector.broadcast %15 : vector<1x128xf32> to vector<128x128xf32>
    %17 = arith.addf %14, %16 : vector<128x128xf32>
    %cst_11 = arith.constant 0.000000e+00 : f32
    %18 = vector.broadcast %cst_11 : f32 to vector<128x128xf32>
    %19 = arith.cmpf ogt, %17, %18 : vector<128x128xf32>
    %cst_12 = arith.constant 0.00999999977 : f32
    %20 = vector.broadcast %cst_12 : f32 to vector<128x128xf32>
    %21 = arith.mulf %20, %17 : vector<128x128xf32>
    %22 = arith.select %19, %17, %21 : vector<128x128xi1>, vector<128x128xf32>
    %23 = arith.truncf %22 : vector<128x128xf32> to vector<128x128xbf16>
    %c0_13 = arith.constant 0 : index
    %c0_14 = arith.constant 0 : index
    %c0_15 = arith.constant 0 : index
    %24 = vector.load %arg4[%c0_13, %c0_14, %c0_15] : memref<4x128x128xbf16, #tpu.memory_space<vmem>>, vector<1x128x128xbf16>
    %25 = vector.shape_cast %24 : vector<1x128x128xbf16> to vector<128x128xbf16>
    %cst_16 = arith.constant dense<0.000000e+00> : vector<128x128xf32>
    %26 = tpu.matmul %23, %25, %cst_16 {dimension_numbers = #tpu.dot_dimension_numbers<[1], [0], [0], [1], [0, 0, 1, 1], [], []>} : vector<128x128xbf16>, vector<128x128xbf16>, vector<128x128xf32> -> vector<128x128xf32>
    %c2 = arith.constant 2 : index
    %c0_17 = arith.constant 0 : index
    %27 = vector.load %arg5[%c2, %c0_17] : memref<6x256xf32, #tpu.memory_space<vmem>>, vector<1x128xf32>
    %28 = vector.broadcast %27 : vector<1x128xf32> to vector<128x128xf32>
    %29 = arith.addf %26, %28 : vector<128x128xf32>
    %cst_18 = arith.constant 0.000000e+00 : f32
    %30 = vector.broadcast %cst_18 : f32 to vector<128x128xf32>
    %31 = arith.cmpf ogt, %29, %30 : vector<128x128xf32>
    %cst_19 = arith.constant 0.00999999977 : f32
    %32 = vector.broadcast %cst_19 : f32 to vector<128x128xf32>
    %33 = arith.mulf %32, %29 : vector<128x128xf32>
    %34 = arith.select %31, %29, %33 : vector<128x128xi1>, vector<128x128xf32>
    %35 = arith.truncf %34 : vector<128x128xf32> to vector<128x128xbf16>
    %c1_20 = arith.constant 1 : index
    %c0_21 = arith.constant 0 : index
    %c0_22 = arith.constant 0 : index
    %36 = vector.load %arg4[%c1_20, %c0_21, %c0_22] : memref<4x128x128xbf16, #tpu.memory_space<vmem>>, vector<1x128x128xbf16>
    %37 = vector.shape_cast %36 : vector<1x128x128xbf16> to vector<128x128xbf16>
    %cst_23 = arith.constant dense<0.000000e+00> : vector<128x128xf32>
    %38 = tpu.matmul %35, %37, %cst_23 {dimension_numbers = #tpu.dot_dimension_numbers<[1], [0], [0], [1], [0, 0, 1, 1], [], []>} : vector<128x128xbf16>, vector<128x128xbf16>, vector<128x128xf32> -> vector<128x128xf32>
    %c3 = arith.constant 3 : index
    %c0_24 = arith.constant 0 : index
    %39 = vector.load %arg5[%c3, %c0_24] : memref<6x256xf32, #tpu.memory_space<vmem>>, vector<1x128xf32>
    %40 = vector.broadcast %39 : vector<1x128xf32> to vector<128x128xf32>
    %41 = arith.addf %38, %40 : vector<128x128xf32>
    %cst_25 = arith.constant 0.000000e+00 : f32
    %42 = vector.broadcast %cst_25 : f32 to vector<128x128xf32>
    %43 = arith.cmpf ogt, %41, %42 : vector<128x128xf32>
    %cst_26 = arith.constant 0.00999999977 : f32
    %44 = vector.broadcast %cst_26 : f32 to vector<128x128xf32>
    %45 = arith.mulf %44, %41 : vector<128x128xf32>
    %46 = arith.select %43, %41, %45 : vector<128x128xi1>, vector<128x128xf32>
    %47 = arith.truncf %46 : vector<128x128xf32> to vector<128x128xbf16>
    %c2_27 = arith.constant 2 : index
    %c0_28 = arith.constant 0 : index
    %c0_29 = arith.constant 0 : index
    %48 = vector.load %arg4[%c2_27, %c0_28, %c0_29] : memref<4x128x128xbf16, #tpu.memory_space<vmem>>, vector<1x128x128xbf16>
    %49 = vector.shape_cast %48 : vector<1x128x128xbf16> to vector<128x128xbf16>
    %cst_30 = arith.constant dense<0.000000e+00> : vector<128x128xf32>
    %50 = tpu.matmul %47, %49, %cst_30 {dimension_numbers = #tpu.dot_dimension_numbers<[1], [0], [0], [1], [0, 0, 1, 1], [], []>} : vector<128x128xbf16>, vector<128x128xbf16>, vector<128x128xf32> -> vector<128x128xf32>
    %c4 = arith.constant 4 : index
    %c0_31 = arith.constant 0 : index
    %51 = vector.load %arg5[%c4, %c0_31] : memref<6x256xf32, #tpu.memory_space<vmem>>, vector<1x128xf32>
    %52 = vector.broadcast %51 : vector<1x128xf32> to vector<128x128xf32>
    %53 = arith.addf %50, %52 : vector<128x128xf32>
    %cst_32 = arith.constant 0.000000e+00 : f32
    %54 = vector.broadcast %cst_32 : f32 to vector<128x128xf32>
    %55 = arith.cmpf ogt, %53, %54 : vector<128x128xf32>
    %cst_33 = arith.constant 0.00999999977 : f32
    %56 = vector.broadcast %cst_33 : f32 to vector<128x128xf32>
    %57 = arith.mulf %56, %53 : vector<128x128xf32>
    %58 = arith.select %55, %53, %57 : vector<128x128xi1>, vector<128x128xf32>
    %59 = arith.truncf %58 : vector<128x128xf32> to vector<128x128xbf16>
    %c3_34 = arith.constant 3 : index
    %c0_35 = arith.constant 0 : index
    %c0_36 = arith.constant 0 : index
    %60 = vector.load %arg4[%c3_34, %c0_35, %c0_36] : memref<4x128x128xbf16, #tpu.memory_space<vmem>>, vector<1x128x128xbf16>
    %61 = vector.shape_cast %60 : vector<1x128x128xbf16> to vector<128x128xbf16>
    %cst_37 = arith.constant dense<0.000000e+00> : vector<128x128xf32>
    %62 = tpu.matmul %59, %61, %cst_37 {dimension_numbers = #tpu.dot_dimension_numbers<[1], [0], [0], [1], [0, 0, 1, 1], [], []>} : vector<128x128xbf16>, vector<128x128xbf16>, vector<128x128xf32> -> vector<128x128xf32>
    %c5 = arith.constant 5 : index
    %c0_38 = arith.constant 0 : index
    %63 = vector.load %arg5[%c5, %c0_38] : memref<6x256xf32, #tpu.memory_space<vmem>>, vector<1x128xf32>
    %64 = vector.broadcast %63 : vector<1x128xf32> to vector<128x128xf32>
    %65 = arith.addf %62, %64 : vector<128x128xf32>
    %cst_39 = arith.constant 0.000000e+00 : f32
    %66 = vector.broadcast %cst_39 : f32 to vector<128x128xf32>
    %67 = arith.cmpf ogt, %65, %66 : vector<128x128xf32>
    %cst_40 = arith.constant 0.00999999977 : f32
    %68 = vector.broadcast %cst_40 : f32 to vector<128x128xf32>
    %69 = arith.mulf %68, %65 : vector<128x128xf32>
    %70 = arith.select %67, %65, %69 : vector<128x128xi1>, vector<128x128xf32>
    %c0_41 = arith.constant 0 : index
    %c0_42 = arith.constant 0 : index
    %71 = vector.load %arg6[%c0_41, %c0_42] : memref<128x128xf32, #tpu.memory_space<vmem>>, vector<128x128xf32>
    tpu.vector_store %arg6[%c0_41, %c0_42], %70 {strides = array<i32>} : memref<128x128xf32, #tpu.memory_space<vmem>>, vector<128x128xf32>,
    return
  }
  func.func @transform_0(%arg0: i32) -> (i32, i32) {
    %c0_i32 = arith.constant 0 : i32
    %c0_i32_0 = arith.constant 0 : i32
    return %arg0, %c0_i32 : i32, i32
  }
  func.func @transform_1(%arg0: i32) -> (i32, i32) {
    %c0_i32 = arith.constant 0 : i32
    %c0_i32_0 = arith.constant 0 : i32
    %c0_i32_1 = arith.constant 0 : i32
    return %c0_i32, %c0_i32_0 : i32, i32
  }
  func.func @transform_2(%arg0: i32) -> (i32, i32) {
    %c0_i32 = arith.constant 0 : i32
    %c0_i32_0 = arith.constant 0 : i32
    %c0_i32_1 = arith.constant 0 : i32
    return %c0_i32, %c0_i32_0 : i32, i32
  }
  func.func @transform_3(%arg0: i32) -> (i32, i32, i32) {
    %c0_i32 = arith.constant 0 : i32
    %c0_i32_0 = arith.constant 0 : i32
    %c0_i32_1 = arith.constant 0 : i32
    %c0_i32_2 = arith.constant 0 : i32
    return %c0_i32, %c0_i32_0, %c0_i32_1 : i32, i32, i32
  }
  func.func @transform_4(%arg0: i32) -> (i32, i32) {
    %c0_i32 = arith.constant 0 : i32
    %c0_i32_0 = arith.constant 0 : i32
    %c0_i32_1 = arith.constant 0 : i32
    return %c0_i32, %c0_i32_0 : i32, i32
  }
  func.func @transform_5(%arg0: i32) -> (i32, i32) {
    %c0_i32 = arith.constant 0 : i32
    %c0_i32_0 = arith.constant 0 : i32
    return %arg0, %c0_i32 : i32, i32
  }
}

</mosaic_0001>

<llo_original>
// kernel: mlp_forward.1
$region0: #{mlp_forward.1}
  #allocation0 [shape = 'u32[]', space=smem, size = 0x4, offset = 0x4, fixed_abs, tag = 'smem constant byte address 0x4 - core index']
  #allocation1 [shape = 'u32[144,128]{1,0:T(1,128)}', space=vmem, size = 0x12000, scoped, tag = 'internal scratch']
  %s0 = inlined_call_operand.vmem [shape: f32[256,128], index: 0, kind: input, shape index: {}]
  %s1 = inlined_call_operand.vmem [shape: bf16[128,256], index: 1, kind: input, shape index: {}]
  %s2 = inlined_call_operand.vmem [shape: bf16[256,128], index: 2, kind: input, shape index: {}]
  %s3 = inlined_call_operand.vmem [shape: bf16[4,128,128], index: 3, kind: input, shape index: {}]
  %s4 = inlined_call_operand.vmem [shape: f32[6,256], index: 4, kind: input, shape index: {}]
  %s5 = inlined_call_operand.vmem [shape: f32[256,128], index: 5, kind: output, shape index: {}]
  %s6 = sld [smem:[#allocation0]]
  $region53: #{mlp_forward.1} parent=0
    _
  %s8 = ssub.s32 1, %s6
  %s9 = scalar_select 0, %s8, %s6
  loop: start=0, step=1, limit=4
  $region2: #{mlp_forward.1} parent=0 // loop_pre_header
    _
  $region3: #{mlp_forward.1} parent=0 // loop_header
    %s11 = sphi 0, %s15
    %p12 = scmp.ge.s32.totalorder %s11, 4
    %s21 = sphi 0, %s23
    %s24 = sphi 0, %s21
    %s25 = sphi 0, %s24
    %s41 = sphi 0, %s25
    %s45 = sphi 0, %s45
    %s47 = sphi 0, %s45
    %s48 = sphi 0, %s47
    %s62 = sphi 0, %s48
    %s66 = sphi 0, %s66
    %s68 = sphi 0, %s66
    %s69 = sphi 0, %s68
    %s83 = sphi 0, %s69
    %s87 = sphi 0, %s87
    %s89 = sphi 0, %s87
    %s90 = sphi 0, %s89
    %s104 = sphi 0, %s90
    %s108 = sphi 0, %s108
    %s110 = sphi 0, %s108
    %s111 = sphi 0, %s110
    %s125 = sphi 0, %s111
    %s131 = sphi 0, %s133
    %s134 = sphi 0, %s131
    %s135 = sphi 0, %s134
    %s151 = sphi 0, %s135
  $region4: #{mlp_forward.1} parent=0 // loop_header_branch
    %14 = sbr.rel (%p12) target = $region8
  $region5: #{mlp_forward.1} parent=0 // loop_body
    %s16 = ssub.s32 %s11, 1
    %s17 = ssub.s32 %s11, 2
    %s18 = sadd.s32 %s11, 1
    %s19 = ssub.s32 %s11, %s18
    %p20 = scmp.eq.s32.totalorder %s19, 0
    %s22 = sadd.s32 %s21, 1
    %s23 = scalar_select %p20, %s21, %s22
    %p26 = pneg %p20
    %p27 = scmp.eq.s32.totalorder %s11, 1
    %p28 = por %p26, %p27
    %p29 = scmp.ne.s32.totalorder %s21, %s24
    %p30 = scmp.eq.s32.totalorder %s11, 0
    %p31 = por %p29, %p30
    %p32 = scmp.ne.s32.totalorder %s21, %s24
    %p33 = scmp.eq.s32.totalorder %s16, 1
    %p34 = por %p32, %p33
    %p35 = scmp.ne.s32.totalorder %s24, %s25
    %p36 = scmp.eq.s32.totalorder %s16, 0
    %p37 = por %p35, %p36
    %p38 = scmp.ne.s32.totalorder %s24, %s25
    %p39 = scmp.eq.s32.totalorder %s17, 1
    %p40 = por %p38, %p39
    %p42 = scmp.ne.s32.totalorder %s25, %s41
    %p43 = scmp.eq.s32.totalorder %s17, 0
    %p44 = por %p42, %p43
    %s46 = sadd.s32 %s45, 1
    %p49 = scmp.eq.s32.totalorder %s11, 1
    %p50 = scmp.ne.s32.totalorder %s45, %s47
    %p51 = scmp.eq.s32.totalorder %s11, 0
    %p52 = por %p50, %p51
    %p53 = scmp.ne.s32.totalorder %s45, %s47
    %p54 = scmp.eq.s32.totalorder %s16, 1
    %p55 = por %p53, %p54
    %p56 = scmp.ne.s32.totalorder %s47, %s48
    %p57 = scmp.eq.s32.totalorder %s16, 0
    %p58 = por %p56, %p57
    %p59 = scmp.ne.s32.totalorder %s47, %s48
    %p60 = scmp.eq.s32.totalorder %s17, 1
    %p61 = por %p59, %p60
    %p63 = scmp.ne.s32.totalorder %s48, %s62
    %p64 = scmp.eq.s32.totalorder %s17, 0
    %p65 = por %p63, %p64
    %s67 = sadd.s32 %s66, 1
    %p70 = scmp.eq.s32.totalorder %s11, 1
    %p71 = scmp.ne.s32.totalorder %s66, %s68
    %p72 = scmp.eq.s32.totalorder %s11, 0
    %p73 = por %p71, %p72
    %p74 = scmp.ne.s32.totalorder %s66, %s68
    %p75 = scmp.eq.s32.totalorder %s16, 1
    %p76 = por %p74, %p75
    %p77 = scmp.ne.s32.totalorder %s68, %s69
    %p78 = scmp.eq.s32.totalorder %s16, 0
    %p79 = por %p77, %p78
    %p80 = scmp.ne.s32.totalorder %s68, %s69
    %p81 = scmp.eq.s32.totalorder %s17, 1
    %p82 = por %p80, %p81
    %p84 = scmp.ne.s32.totalorder %s69, %s83
    %p85 = scmp.eq.s32.totalorder %s17, 0
    %p86 = por %p84, %p85
    %s88 = sadd.s32 %s87, 1
    %p91 = scmp.eq.s32.totalorder %s11, 1
    %p92 = scmp.ne.s32.totalorder %s87, %s89
    %p93 = scmp.eq.s32.totalorder %s11, 0
    %p94 = por %p92, %p93
    %p95 = scmp.ne.s32.totalorder %s87, %s89
    %p96 = scmp.eq.s32.totalorder %s16, 1
    %p97 = por %p95, %p96
    %p98 = scmp.ne.s32.totalorder %s89, %s90
    %p99 = scmp.eq.s32.totalorder %s16, 0
    %p100 = por %p98, %p99
    %p101 = scmp.ne.s32.totalorder %s89, %s90
    %p102 = scmp.eq.s32.totalorder %s17, 1
    %p103 = por %p101, %p102
    %p105 = scmp.ne.s32.totalorder %s90, %s104
    %p106 = scmp.eq.s32.totalorder %s17, 0
    %p107 = por %p105, %p106
    %s109 = sadd.s32 %s108, 1
    %p112 = scmp.eq.s32.totalorder %s11, 1
    %p113 = scmp.ne.s32.totalorder %s108, %s110
    %p114 = scmp.eq.s32.totalorder %s11, 0
    %p115 = por %p113, %p114
    %p116 = scmp.ne.s32.totalorder %s108, %s110
    %p117 = scmp.eq.s32.totalorder %s16, 1
    %p118 = por %p116, %p117
    %p119 = scmp.ne.s32.totalorder %s110, %s111
    %p120 = scmp.eq.s32.totalorder %s16, 0
    %p121 = por %p119, %p120
    %p122 = scmp.ne.s32.totalorder %s110, %s111
    %p123 = scmp.eq.s32.totalorder %s17, 1
    %p124 = por %p122, %p123
    %p126 = scmp.ne.s32.totalorder %s111, %s125
    %p127 = scmp.eq.s32.totalorder %s17, 0
    %p128 = por %p126, %p127
    %s129 = ssub.s32 %s11, %s18
    %p130 = scmp.eq.s32.totalorder %s129, 0
    %s132 = sadd.s32 %s131, 1
    %s133 = scalar_select %p130, %s131, %s132
    %p136 = pneg %p130
    %p137 = scmp.eq.s32.totalorder %s11, 1
    %p138 = por %p136, %p137
    %p139 = scmp.ne.s32.totalorder %s131, %s134
    %p140 = scmp.eq.s32.totalorder %s11, 0
    %p141 = por %p139, %p140
    %p142 = scmp.ne.s32.totalorder %s131, %s134
    %p143 = scmp.eq.s32.totalorder %s16, 1
    %p144 = por %p142, %p143
    %p145 = scmp.ne.s32.totalorder %s134, %s135
    %p146 = scmp.eq.s32.totalorder %s16, 0
    %p147 = por %p145, %p146
    %p148 = scmp.ne.s32.totalorder %s134, %s135
    %p149 = scmp.eq.s32.totalorder %s17, 1
    %p150 = por %p148, %p149
    %p152 = scmp.ne.s32.totalorder %s135, %s151
    %p153 = scmp.eq.s32.totalorder %s17, 0
    %p154 = por %p152, %p153
    %p155 = scmp.le.s32.totalorder 1, %s11
    %p156 = scmp.lt.s32.totalorder %s11, 3
    %p157 = pnand %p155, %p156
    %p158 = pneg %p157
    // Predicated region
    $region9: #{mlp_forward.1} parent=5 // pred_check
      _
    $region10: #{mlp_forward.1} parent=5 // pred_check_branch
      %160 = sbr.rel (%p157) target = $region12
    $region11: #{mlp_forward.1} parent=5 // pred_region
      %s161 = ssub.s32 %s11, 1
      // Predicated region
      $region13: #{mlp_forward.1} parent=11 // pred_check
        %p162 = pneg %p58
      $region14: #{mlp_forward.1} parent=11 // pred_check_branch
        %164 = sbr.rel (%p162) target = $region16
      $region15: #{mlp_forward.1} parent=11 // pred_region
        _
      $region16: #{mlp_forward.1} parent=11 // pred_fallthru
        _
      // Predicated region
      $region17: #{mlp_forward.1} parent=11 // pred_check
        %p165 = pneg %p79
      $region18: #{mlp_forward.1} parent=11 // pred_check_branch
        %167 = sbr.rel (%p165) target = $region20
      $region19: #{mlp_forward.1} parent=11 // pred_region
        _
      $region20: #{mlp_forward.1} parent=11 // pred_fallthru
        _
      // Predicated region
      $region21: #{mlp_forward.1} parent=11 // pred_check
        %p168 = pneg %p100
      $region22: #{mlp_forward.1} parent=11 // pred_check_branch
        %170 = sbr.rel (%p168) target = $region24
      $region23: #{mlp_forward.1} parent=11 // pred_region
        _
      $region24: #{mlp_forward.1} parent=11 // pred_fallthru
        _
      // Predicated region
      $region25: #{mlp_forward.1} parent=11 // pred_check
        %p171 = pneg %p121
      $region26: #{mlp_forward.1} parent=11 // pred_check_branch
        %173 = sbr.rel (%p171) target = $region28
      $region27: #{mlp_forward.1} parent=11 // pred_region
        _
      $region28: #{mlp_forward.1} parent=11 // pred_fallthru
        _
    $region12: #{mlp_forward.1} parent=5 // pred_fallthru
      _
    %p174 = scmp.lt.s32.totalorder %s11, 2
    // Predicated region
    $region29: #{mlp_forward.1} parent=5 // pred_check
      %p175 = pneg %p174
    $region30: #{mlp_forward.1} parent=5 // pred_check_branch
      %177 = sbr.rel (%p175) target = $region32
    $region31: #{mlp_forward.1} parent=5 // pred_region
      // Predicated region
      $region33: #{mlp_forward.1} parent=31 // pred_check
        %p178 = pneg %p31
      $region34: #{mlp_forward.1} parent=31 // pred_check_branch
        %180 = sbr.rel (%p178) target = $region36
      $region35: #{mlp_forward.1} parent=31 // pred_region
        %s181 = smul.u32 16, %s11
        %p182 = scmp.lt.s32.totalorder %s181, 31
        %s183 = scalar_select %p182, %s181, 31
        %s184 = smul.addr %s183, 8
        %s185 = scalar_lea.vmem %s0, %s184
        %s186 = smul.u32 16, %s11
      $region36: #{mlp_forward.1} parent=31 // pred_fallthru
        _
    $region32: #{mlp_forward.1} parent=5 // pred_fallthru
      _
    %p187 = scmp.le.s32.totalorder 1, %s11
    %p188 = scmp.lt.s32.totalorder %s11, 3
    %p189 = pnand %p187, %p188
    %p190 = pneg %p189
    // Predicated region
    $region37: #{mlp_forward.1} parent=5 // pred_check
      _
    $region38: #{mlp_forward.1} parent=5 // pred_check_branch
      %192 = sbr.rel (%p189) target = $region40
    $region39: #{mlp_forward.1} parent=5 // pred_region
      %s193 = ssub.s32 %s11, 1
      %s194 = smul.u32 16, %s16
      %p195 = scmp.lt.s32.totalorder %s194, 31
      %s196 = scalar_select %p195, %s194, 31
      %s197 = smul.addr %s196, 8
      %s198 = scalar_lea.vmem %s0, %s197
      %p199 = pneg %p37
      %p200 = pneg %p34
      %p201 = pneg %p58
      %p202 = pneg %p55
      %p203 = pneg %p79
      %p204 = pneg %p76
      %p205 = pneg %p100
      %p206 = pneg %p97
      %p207 = pneg %p121
      %p208 = pneg %p118
      %p209 = pneg %p147
      %p210 = pneg %p144
      %s211 = smul.u32 16, %s16
      %p212 = scmp.lt.s32.totalorder %s211, 31
      %s213 = scalar_select %p212, %s211, 31
      %s214 = smul.addr %s213, 8
      %s215 = scalar_lea.vmem %s5, %s214
      %s216 = smul.u32 16, %s16
      %p217 = scmp.lt.s32.totalorder %s216, 31
      %s218 = scalar_select %p217, %s216, 31
      %s219 = smul.addr %s218, 8
      %s220 = scalar_lea.vmem %s0, %s219
      %s221 = smul.u32 16, %s16
      %s222 = smul.u32 16, %s16
      %p223 = scmp.lt.s32.totalorder %s222, 31
      %s224 = scalar_select %p223, %s222, 31
      %s225 = smul.addr %s224, 8
      %s226 = scalar_lea.vmem %s5, %s225
      %s227 = smul.u32 16, %s16
      %v229 = vld [vmem:[%s220] sm:$0xff]
      %v230 = vld [vmem:[%s220 + $0x8] sm:$0xff]
      %v231 = vld [vmem:[%s220 + $0x10] sm:$0xff]
      %v232 = vld [vmem:[%s220 + $0x18] sm:$0xff]
      %v233 = vld [vmem:[%s220 + $0x20] sm:$0xff]
      %v234 = vld [vmem:[%s220 + $0x28] sm:$0xff]
      %v235 = vld [vmem:[%s220 + $0x30] sm:$0xff]
      %v236 = vld [vmem:[%s220 + $0x38] sm:$0xff]
      %v237 = vld [vmem:[%s220 + $0x40] sm:$0xff]
      %v238 = vld [vmem:[%s220 + $0x48] sm:$0xff]
      %v239 = vld [vmem:[%s220 + $0x50] sm:$0xff]
      %v240 = vld [vmem:[%s220 + $0x58] sm:$0xff]
      %v241 = vld [vmem:[%s220 + $0x60] sm:$0xff]
      %v242 = vld [vmem:[%s220 + $0x68] sm:$0xff]
      %v243 = vld [vmem:[%s220 + $0x70] sm:$0xff]
      %v244 = vld [vmem:[%s220 + $0x78] sm:$0xff]
      %v245 = vpack.c.bf16 %v230, %v229
      %v246 = vpack.c.bf16 %v232, %v231
      %v247 = vpack.c.bf16 %v234, %v233
      %v248 = vpack.c.bf16 %v236, %v235
      %v249 = vpack.c.bf16 %v238, %v237
      %v250 = vpack.c.bf16 %v240, %v239
      %v251 = vpack.c.bf16 %v242, %v241
      %v252 = vpack.c.bf16 %v244, %v243
      %v253 = vld [vmem:[%s1] sm:$0xff]
      %v254 = vld [vmem:[%s1 + $0x8] sm:$0xff]
      %v255 = vld [vmem:[%s1 + $0x10] sm:$0xff]
      %v256 = vld [vmem:[%s1 + $0x18] sm:$0xff]
      %v257 = vld [vmem:[%s1 + $0x20] sm:$0xff]
      %v258 = vld [vmem:[%s1 + $0x28] sm:$0xff]
      %v259 = vld [vmem:[%s1 + $0x30] sm:$0xff]
      %v260 = vld [vmem:[%s1 + $0x38] sm:$0xff]
      %v261 = vld [vmem:[%s1 + $0x40] sm:$0xff]
      %v262 = vld [vmem:[%s1 + $0x48] sm:$0xff]
      %v263 = vld [vmem:[%s1 + $0x50] sm:$0xff]
      %v264 = vld [vmem:[%s1 + $0x58] sm:$0xff]
      %v265 = vld [vmem:[%s1 + $0x60] sm:$0xff]
      %v266 = vld [vmem:[%s1 + $0x68] sm:$0xff]
      %v267 = vld [vmem:[%s1 + $0x70] sm:$0xff]
      %v268 = vld [vmem:[%s1 + $0x78] sm:$0xff]
      %v269 = vld [vmem:[%s4] ss:$8 sm:$0x3]
      %v271 = vlaneseq
      %v272 = vshrl.u32 %v271, 7
      %v273 = vsub.s32 0, %v272
      %v274 = vrot.slane %v269, %v273
      %v275 = vlaneseq
      %v276 = vshrl.u32 %v275, 7
      %v277 = vsub.s32 1, %v276
      %v278 = vrot.slane %v269, %v277
      %v297 = vunpack.c.l.b16 %v253
      %v298 = vunpack.c.h.b16 %v253
      %v299 = vunpack.c.l.b16 %v254
      %v300 = vunpack.c.h.b16 %v254
      %v301 = vunpack.c.l.b16 %v255
      %v302 = vunpack.c.h.b16 %v255
      %v303 = vunpack.c.l.b16 %v256
      %v304 = vunpack.c.h.b16 %v256
      %v305 = vunpack.c.l.b16 %v257
      %v306 = vunpack.c.h.b16 %v257
      %v307 = vunpack.c.l.b16 %v258
      %v308 = vunpack.c.h.b16 %v258
      %v309 = vunpack.c.l.b16 %v259
      %v310 = vunpack.c.h.b16 %v259
      %v311 = vunpack.c.l.b16 %v260
      %v312 = vunpack.c.h.b16 %v260
      %v313 = vunpack.c.l.b16 %v261
      %v314 = vunpack.c.h.b16 %v261
      %v315 = vunpack.c.l.b16 %v262
      %v316 = vunpack.c.h.b16 %v262
      %v317 = vunpack.c.l.b16 %v263
      %v318 = vunpack.c.h.b16 %v263
      %v319 = vunpack.c.l.b16 %v264
      %v320 = vunpack.c.h.b16 %v264
      %v321 = vunpack.c.l.b16 %v265
      %v322 = vunpack.c.h.b16 %v265
      %v323 = vunpack.c.l.b16 %v266
      %v324 = vunpack.c.h.b16 %v266
      %v325 = vunpack.c.l.b16 %v267
      %v326 = vunpack.c.h.b16 %v267
      %v327 = vunpack.c.l.b16 %v268
      %v328 = vunpack.c.h.b16 %v268
      %v329 = vpack.c.b16 %v299, %v297
      %v330 = vpack.c.b16 %v300, %v298
      %v331 = vpack.c.b16 %v303, %v301
      %v332 = vpack.c.b16 %v304, %v302
      %v333 = vpack.c.b16 %v307, %v305
      %v334 = vpack.c.b16 %v308, %v306
      %v335 = vpack.c.b16 %v311, %v309
      %v336 = vpack.c.b16 %v312, %v310
      %v337 = vpack.c.b16 %v315, %v313
      %v338 = vpack.c.b16 %v316, %v314
      %v339 = vpack.c.b16 %v319, %v317
      %v340 = vpack.c.b16 %v320, %v318
      %v341 = vpack.c.b16 %v323, %v321
      %v342 = vpack.c.b16 %v324, %v322
      %v343 = vpack.c.b16 %v327, %v325
      %v344 = vpack.c.b16 %v328, %v326
      %361 = vmatprep.subr.bf16.mxu0 %v330
      %362 = vmatpush1.bf16.msra.mxu0 %v329
      %363 = vmatprep.subr.bf16.mxu0 %v332
      %364 = vmatpush1.bf16.msra.mxu0 %v331
      %365 = vmatprep.subr.bf16.mxu0 %v334
      %366 = vmatpush1.bf16.msra.mxu0 %v333
      %367 = vmatprep.subr.bf16.mxu0 %v336
      %368 = vmatpush1.bf16.msra.mxu0 %v335
      %369 = vmatprep.subr.bf16.mxu0 %v338
      %370 = vmatpush1.bf16.msra.mxu0 %v337
      %371 = vmatprep.subr.bf16.mxu0 %v340
      %372 = vmatpush1.bf16.msra.mxu0 %v339
      %373 = vmatprep.subr.bf16.mxu0 %v342
      %374 = vmatpush1.bf16.msra.mxu0 %v341
      %375 = vmatprep.subr.bf16.mxu0 %v344
      %376 = vmatpush1.bf16.msra.mxu0 %v343
      %377 = vmatprep.subr.bf16.mxu0 0
      %378 = vmatpush1.bf16.msra.mxu0 0
      %379 = vmatprep.subr.bf16.mxu0 0
      %380 = vmatpush1.bf16.msra.mxu0 0
      %381 = vmatprep.subr.bf16.mxu0 0
      %382 = vmatpush1.bf16.msra.mxu0 0
      %383 = vmatprep.subr.bf16.mxu0 0
      %384 = vmatpush1.bf16.msra.mxu0 0
      %385 = vmatprep.subr.bf16.mxu0 0
      %386 = vmatpush1.bf16.msra.mxu0 0
      %387 = vmatprep.subr.bf16.mxu0 0
      %388 = vmatpush1.bf16.msra.mxu0 0
      %389 = vmatprep.subr.bf16.mxu0 0
      %390 = vmatpush1.bf16.msra.mxu0 0
      %391 = vmatprep.subr.bf16.mxu0 0
      %392 = vmatpush1.bf16.msra.mxu0 0
      %393 = vmatprep.mubr.bf16.mxu0 0
      %394 = vmatmul.mubr.bf16.gmra.mrb[0].mxu0 %v245
      %v395 = vpop.f32.mrb[0].mxu0
      %v396 = vadd.f32 %v274, %v395
      %v397 = vpop.f32.mrb[0].mxu0
      %v398 = vadd.f32 %v278, %v397
      %v399 = vpop.f32.mrb[0].mxu0
      %v400 = vadd.f32 %v274, %v399
      %v401 = vpop.f32.mrb[0].mxu0
      %v402 = vadd.f32 %v278, %v401
      %403 = vmatprep.mubr.bf16.mxu0 0
      %404 = vmatmul.mubr.bf16.gmra.mrb[0].mxu0 %v246
      %v405 = vpop.f32.mrb[0].mxu0
      %v406 = vadd.f32 %v274, %v405
      %v407 = vpop.f32.mrb[0].mxu0
      %v408 = vadd.f32 %v278, %v407
      %v409 = vpop.f32.mrb[0].mxu0
      %v410 = vadd.f32 %v274, %v409
      %v411 = vpop.f32.mrb[0].mxu0
      %v412 = vadd.f32 %v278, %v411
      %413 = vmatprep.mubr.bf16.mxu0 0
      %414 = vmatmul.mubr.bf16.gmra.mrb[0].mxu0 %v247
      %v415 = vpop.f32.mrb[0].mxu0
      %v416 = vadd.f32 %v274, %v415
      %v417 = vpop.f32.mrb[0].mxu0
      %v418 = vadd.f32 %v278, %v417
      %v419 = vpop.f32.mrb[0].mxu0
      %v420 = vadd.f32 %v274, %v419
      %v421 = vpop.f32.mrb[0].mxu0
      %v422 = vadd.f32 %v278, %v421
      %423 = vmatprep.mubr.bf16.mxu0 0
      %424 = vmatmul.mubr.bf16.gmra.mrb[0].mxu0 %v248
      %v425 = vpop.f32.mrb[0].mxu0
      %v426 = vadd.f32 %v274, %v425
      %v427 = vpop.f32.mrb[0].mxu0
      %v428 = vadd.f32 %v278, %v427
      %v429 = vpop.f32.mrb[0].mxu0
      %v430 = vadd.f32 %v274, %v429
      %v431 = vpop.f32.mrb[0].mxu0
      %v432 = vadd.f32 %v278, %v431
      %433 = vmatprep.mubr.bf16.mxu0 0
      %434 = vmatmul.mubr.bf16.gmra.mrb[0].mxu0 %v249
      %v435 = vpop.f32.mrb[0].mxu0
      %v436 = vadd.f32 %v274, %v435
      %v437 = vpop.f32.mrb[0].mxu0
      %v438 = vadd.f32 %v278, %v437
      %v439 = vpop.f32.mrb[0].mxu0
      %v440 = vadd.f32 %v274, %v439
      %v441 = vpop.f32.mrb[0].mxu0
      %v442 = vadd.f32 %v278, %v441
      %443 = vmatprep.mubr.bf16.mxu0 0
      %444 = vmatmul.mubr.bf16.gmra.mrb[0].mxu0 %v250
      %v445 = vpop.f32.mrb[0].mxu0
      %v446 = vadd.f32 %v274, %v445
      %v447 = vpop.f32.mrb[0].mxu0
      %v448 = vadd.f32 %v278, %v447
      %v449 = vpop.f32.mrb[0].mxu0
      %v450 = vadd.f32 %v274, %v449
      %v451 = vpop.f32.mrb[0].mxu0
      %v452 = vadd.f32 %v278, %v451
      %453 = vmatprep.mubr.bf16.mxu0 0
      %454 = vmatmul.mubr.bf16.gmra.mrb[0].mxu0 %v251
      %v455 = vpop.f32.mrb[0].mxu0
      %v456 = vadd.f32 %v274, %v455
      %v457 = vpop.f32.mrb[0].mxu0
      %v458 = vadd.f32 %v278, %v457
      %v459 = vpop.f32.mrb[0].mxu0
      %v460 = vadd.f32 %v274, %v459
      %v461 = vpop.f32.mrb[0].mxu0
      %v462 = vadd.f32 %v278, %v461
      %463 = vmatprep.mubr.bf16.mxu0 0
      %464 = vmatmul.mubr.bf16.gmra.mrb[0].mxu0 %v252
      %v465 = vpop.f32.mrb[0].mxu0
      %v466 = vadd.f32 %v274, %v465
      %v467 = vpop.f32.mrb[0].mxu0
      %v468 = vadd.f32 %v278, %v467
      %v469 = vpop.f32.mrb[0].mxu0
      %v470 = vadd.f32 %v274, %v469
      %v471 = vpop.f32.mrb[0].mxu0
      %v472 = vadd.f32 %v278, %v471
      %473 = vdwg.mxu0
      %vm474 = vcmp.gt.f32.partialorder %v396, 0.0
      %vm475 = vcmp.gt.f32.partialorder %v398, 0.0
      %vm476 = vcmp.gt.f32.partialorder %v400, 0.0
      %vm477 = vcmp.gt.f32.partialorder %v402, 0.0
      %vm478 = vcmp.gt.f32.partialorder %v406, 0.0
      %vm479 = vcmp.gt.f32.partialorder %v408, 0.0
      %vm480 = vcmp.gt.f32.partialorder %v410, 0.0
      %vm481 = vcmp.gt.f32.partialorder %v412, 0.0
      %vm482 = vcmp.gt.f32.partialorder %v416, 0.0
      %vm483 = vcmp.gt.f32.partialorder %v418, 0.0
      %vm484 = vcmp.gt.f32.partialorder %v420, 0.0
      %vm485 = vcmp.gt.f32.partialorder %v422, 0.0
      %vm486 = vcmp.gt.f32.partialorder %v426, 0.0
      %vm487 = vcmp.gt.f32.partialorder %v428, 0.0
      %vm488 = vcmp.gt.f32.partialorder %v430, 0.0
      %vm489 = vcmp.gt.f32.partialorder %v432, 0.0
      %vm490 = vcmp.gt.f32.partialorder %v436, 0.0
      %vm491 = vcmp.gt.f32.partialorder %v438, 0.0
      %vm492 = vcmp.gt.f32.partialorder %v440, 0.0
      %vm493 = vcmp.gt.f32.partialorder %v442, 0.0
      %vm494 = vcmp.gt.f32.partialorder %v446, 0.0
      %vm495 = vcmp.gt.f32.partialorder %v448, 0.0
      %vm496 = vcmp.gt.f32.partialorder %v450, 0.0
      %vm497 = vcmp.gt.f32.partialorder %v452, 0.0
      %vm498 = vcmp.gt.f32.partialorder %v456, 0.0
      %vm499 = vcmp.gt.f32.partialorder %v458, 0.0
      %vm500 = vcmp.gt.f32.partialorder %v460, 0.0
      %vm501 = vcmp.gt.f32.partialorder %v462, 0.0
      %vm502 = vcmp.gt.f32.partialorder %v466, 0.0
      %vm503 = vcmp.gt.f32.partialorder %v468, 0.0
      %vm504 = vcmp.gt.f32.partialorder %v470, 0.0
      %vm505 = vcmp.gt.f32.partialorder %v472, 0.0
      %v506 = vmul.f32 %v396, 0.01
      %v507 = vmul.f32 %v398, 0.01
      %v508 = vmul.f32 %v400, 0.01
      %v509 = vmul.f32 %v402, 0.01
      %v510 = vmul.f32 %v406, 0.01
      %v511 = vmul.f32 %v408, 0.01
      %v512 = vmul.f32 %v410, 0.01
      %v513 = vmul.f32 %v412, 0.01
      %v514 = vmul.f32 %v416, 0.01
      %v515 = vmul.f32 %v418, 0.01
      %v516 = vmul.f32 %v420, 0.01
      %v517 = vmul.f32 %v422, 0.01
      %v518 = vmul.f32 %v426, 0.01
      %v519 = vmul.f32 %v428, 0.01
      %v520 = vmul.f32 %v430, 0.01
      %v521 = vmul.f32 %v432, 0.01
      %v522 = vmul.f32 %v436, 0.01
      %v523 = vmul.f32 %v438, 0.01
      %v524 = vmul.f32 %v440, 0.01
      %v525 = vmul.f32 %v442, 0.01
      %v526 = vmul.f32 %v446, 0.01
      %v527 = vmul.f32 %v448, 0.01
      %v528 = vmul.f32 %v450, 0.01
      %v529 = vmul.f32 %v452, 0.01
      %v530 = vmul.f32 %v456, 0.01
      %v531 = vmul.f32 %v458, 0.01
      %v532 = vmul.f32 %v460, 0.01
      %v533 = vmul.f32 %v462, 0.01
      %v534 = vmul.f32 %v466, 0.01
      %v535 = vmul.f32 %v468, 0.01
      %v536 = vmul.f32 %v470, 0.01
      %v537 = vmul.f32 %v472, 0.01
      %v538 = vsel %vm474, %v396, %v506
      %v539 = vsel %vm475, %v398, %v507
      %v540 = vsel %vm476, %v400, %v508
      %v541 = vsel %vm477, %v402, %v509
      %v542 = vsel %vm478, %v406, %v510
      %v543 = vsel %vm479, %v408, %v511
      %v544 = vsel %vm480, %v410, %v512
      %v545 = vsel %vm481, %v412, %v513
      %v546 = vsel %vm482, %v416, %v514
      %v547 = vsel %vm483, %v418, %v515
      %v548 = vsel %vm484, %v420, %v516
      %v549 = vsel %vm485, %v422, %v517
      %v550 = vsel %vm486, %v426, %v518
      %v551 = vsel %vm487, %v428, %v519
      %v552 = vsel %vm488, %v430, %v520
      %v553 = vsel %vm489, %v432, %v521
      %v554 = vsel %vm490, %v436, %v522
      %v555 = vsel %vm491, %v438, %v523
      %v556 = vsel %vm492, %v440, %v524
      %v557 = vsel %vm493, %v442, %v525
      %v558 = vsel %vm494, %v446, %v526
      %v559 = vsel %vm495, %v448, %v527
      %v560 = vsel %vm496, %v450, %v528
      %v561 = vsel %vm497, %v452, %v529
      %v562 = vsel %vm498, %v456, %v530
      %v563 = vsel %vm499, %v458, %v531
      %v564 = vsel %vm500, %v460, %v532
      %v565 = vsel %vm501, %v462, %v533
      %v566 = vsel %vm502, %v466, %v534
      %v567 = vsel %vm503, %v468, %v535
      %v568 = vsel %vm504, %v470, %v536
      %v569 = vsel %vm505, %v472, %v537
      %v570 = vpack.c.bf16 %v540, %v538
      %v571 = vpack.c.bf16 %v541, %v539
      %v572 = vpack.c.bf16 %v544, %v542
      %v573 = vpack.c.bf16 %v545, %v543
      %v574 = vpack.c.bf16 %v548, %v546
      %v575 = vpack.c.bf16 %v549, %v547
      %v576 = vpack.c.bf16 %v552, %v550
      %v577 = vpack.c.bf16 %v553, %v551
      %v578 = vpack.c.bf16 %v556, %v554
      %v579 = vpack.c.bf16 %v557, %v555
      %v580 = vpack.c.bf16 %v560, %v558
      %v581 = vpack.c.bf16 %v561, %v559
      %v582 = vpack.c.bf16 %v564, %v562
      %v583 = vpack.c.bf16 %v565, %v563
      %v584 = vpack.c.bf16 %v568, %v566
      %v585 = vpack.c.bf16 %v569, %v567
      %v586 = vld [vmem:[%s2] sm:$0xf]
      %v587 = vld [vmem:[%s2 + $0x4] sm:$0xf]
      %v588 = vld [vmem:[%s2 + $0x8] sm:$0xf]
      %v589 = vld [vmem:[%s2 + $0xc] sm:$0xf]
      %v590 = vld [vmem:[%s2 + $0x10] sm:$0xf]
      %v591 = vld [vmem:[%s2 + $0x14] sm:$0xf]
      %v592 = vld [vmem:[%s2 + $0x18] sm:$0xf]
      %v593 = vld [vmem:[%s2 + $0x1c] sm:$0xf]
      %v594 = vld [vmem:[%s2 + $0x20] sm:$0xf]
      %v595 = vld [vmem:[%s2 + $0x24] sm:$0xf]
      %v596 = vld [vmem:[%s2 + $0x28] sm:$0xf]
      %v597 = vld [vmem:[%s2 + $0x2c] sm:$0xf]
      %v598 = vld [vmem:[%s2 + $0x30] sm:$0xf]
      %v599 = vld [vmem:[%s2 + $0x34] sm:$0xf]
      %v600 = vld [vmem:[%s2 + $0x38] sm:$0xf]
      %v601 = vld [vmem:[%s2 + $0x3c] sm:$0xf]
      %v602 = vld [vmem:[%s2 + $0x40] sm:$0xf]
      %v603 = vld [vmem:[%s2 + $0x44] sm:$0xf]
      %v604 = vld [vmem:[%s2 + $0x48] sm:$0xf]
      %v605 = vld [vmem:[%s2 + $0x4c] sm:$0xf]
      %v606 = vld [vmem:[%s2 + $0x50] sm:$0xf]
      %v607 = vld [vmem:[%s2 + $0x54] sm:$0xf]
      %v608 = vld [vmem:[%s2 + $0x58] sm:$0xf]
      %v609 = vld [vmem:[%s2 + $0x5c] sm:$0xf]
      %v610 = vld [vmem:[%s2 + $0x60] sm:$0xf]
      %v611 = vld [vmem:[%s2 + $0x64] sm:$0xf]
      %v612 = vld [vmem:[%s2 + $0x68] sm:$0xf]
      %v613 = vld [vmem:[%s2 + $0x6c] sm:$0xf]
      %v614 = vld [vmem:[%s2 + $0x70] sm:$0xf]
      %v615 = vld [vmem:[%s2 + $0x74] sm:$0xf]
      %v616 = vld [vmem:[%s2 + $0x78] sm:$0xf]
      %v617 = vld [vmem:[%s2 + $0x7c] sm:$0xf]
      %v618 = vld [vmem:[%s4 + $0x1] ss:$0 sm:$0xff]
      %v651 = vunpack.c.l.b16 %v586
      %v652 = vunpack.c.l.b16 %v587
      %v653 = vunpack.c.l.b16 %v588
      %v654 = vunpack.c.l.b16 %v589
      %v655 = vunpack.c.l.b16 %v590
      %v656 = vunpack.c.l.b16 %v591
      %v657 = vunpack.c.l.b16 %v592
      %v658 = vunpack.c.l.b16 %v593
      %v659 = vunpack.c.l.b16 %v594
      %v660 = vunpack.c.l.b16 %v595
      %v661 = vunpack.c.l.b16 %v596
      %v662 = vunpack.c.l.b16 %v597
      %v663 = vunpack.c.l.b16 %v598
      %v664 = vunpack.c.l.b16 %v599
      %v665 = vunpack.c.l.b16 %v600
      %v666 = vunpack.c.l.b16 %v601
      %v667 = vunpack.c.l.b16 %v602
      %v668 = vunpack.c.l.b16 %v603
      %v669 = vunpack.c.l.b16 %v604
      %v670 = vunpack.c.l.b16 %v605
      %v671 = vunpack.c.l.b16 %v606
      %v672 = vunpack.c.l.b16 %v607
      %v673 = vunpack.c.l.b16 %v608
      %v674 = vunpack.c.l.b16 %v609
      %v675 = vunpack.c.l.b16 %v610
      %v676 = vunpack.c.l.b16 %v611
      %v677 = vunpack.c.l.b16 %v612
      %v678 = vunpack.c.l.b16 %v613
      %v679 = vunpack.c.l.b16 %v614
      %v680 = vunpack.c.l.b16 %v615
      %v681 = vunpack.c.l.b16 %v616
      %v682 = vunpack.c.l.b16 %v617
      %v683 = vpack.c.b16 %v652, %v651
      %v684 = vpack.c.b16 %v654, %v653
      %v685 = vpack.c.b16 %v656, %v655
      %v686 = vpack.c.b16 %v658, %v657
      %v687 = vpack.c.b16 %v660, %v659
      %v688 = vpack.c.b16 %v662, %v661
      %v689 = vpack.c.b16 %v664, %v663
      %v690 = vpack.c.b16 %v666, %v665
      %v691 = vpack.c.b16 %v668, %v667
      %v692 = vpack.c.b16 %v670, %v669
      %v693 = vpack.c.b16 %v672, %v671
      %v694 = vpack.c.b16 %v674, %v673
      %v695 = vpack.c.b16 %v676, %v675
      %v696 = vpack.c.b16 %v678, %v677
      %v697 = vpack.c.b16 %v680, %v679
      %v698 = vpack.c.b16 %v682, %v681
      %715 = vmatprep.subr.bf16.mxu0 0
      %716 = vmatpush1.bf16.msra.mxu0 %v683
      %717 = vmatprep.subr.bf16.mxu0 0
      %718 = vmatpush1.bf16.msra.mxu0 %v684
      %719 = vmatprep.subr.bf16.mxu0 0
      %720 = vmatpush1.bf16.msra.mxu0 %v685
      %721 = vmatprep.subr.bf16.mxu0 0
      %722 = vmatpush1.bf16.msra.mxu0 %v686
      %723 = vmatprep.subr.bf16.mxu0 0
      %724 = vmatpush1.bf16.msra.mxu0 %v687
      %725 = vmatprep.subr.bf16.mxu0 0
      %726 = vmatpush1.bf16.msra.mxu0 %v688
      %727 = vmatprep.subr.bf16.mxu0 0
      %728 = vmatpush1.bf16.msra.mxu0 %v689
      %729 = vmatprep.subr.bf16.mxu0 0
      %730 = vmatpush1.bf16.msra.mxu0 %v690
      %731 = vmatprep.subr.bf16.mxu0 0
      %732 = vmatpush1.bf16.msra.mxu0 %v691
      %733 = vmatprep.subr.bf16.mxu0 0
      %734 = vmatpush1.bf16.msra.mxu0 %v692
      %735 = vmatprep.subr.bf16.mxu0 0
      %736 = vmatpush1.bf16.msra.mxu0 %v693
      %737 = vmatprep.subr.bf16.mxu0 0
      %738 = vmatpush1.bf16.msra.mxu0 %v694
      %739 = vmatprep.subr.bf16.mxu0 0
      %740 = vmatpush1.bf16.msra.mxu0 %v695
      %741 = vmatprep.subr.bf16.mxu0 0
      %742 = vmatpush1.bf16.msra.mxu0 %v696
      %743 = vmatprep.subr.bf16.mxu0 0
      %744 = vmatpush1.bf16.msra.mxu0 %v697
      %745 = vmatprep.subr.bf16.mxu0 0
      %746 = vmatpush1.bf16.msra.mxu0 %v698
      %747 = vmatprep.mubr.bf16.mxu0 %v571
      %748 = vmatmul.mubr.bf16.gmra.mrb[0].mxu0 %v570
      %v749 = vpop.f32.mrb[0].mxu0
      %v750 = vadd.f32 %v618, %v749
      %v751 = vpop.f32.mrb[0].mxu0
      %v752 = vpop.f32.mrb[0].mxu0
      %v753 = vadd.f32 %v618, %v752
      %v754 = vpop.f32.mrb[0].mxu0
      %755 = vmatprep.mubr.bf16.mxu0 %v573
      %756 = vmatmul.mubr.bf16.gmra.mrb[0].mxu0 %v572
      %v757 = vpop.f32.mrb[0].mxu0
      %v758 = vadd.f32 %v618, %v757
      %v759 = vpop.f32.mrb[0].mxu0
      %v760 = vpop.f32.mrb[0].mxu0
      %v761 = vadd.f32 %v618, %v760
      %v762 = vpop.f32.mrb[0].mxu0
      %763 = vmatprep.mubr.bf16.mxu0 %v575
      %764 = vmatmul.mubr.bf16.gmra.mrb[0].mxu0 %v574
      %v765 = vpop.f32.mrb[0].mxu0
      %v766 = vadd.f32 %v618, %v765
      %v767 = vpop.f32.mrb[0].mxu0
      %v768 = vpop.f32.mrb[0].mxu0
      %v769 = vadd.f32 %v618, %v768
      %v770 = vpop.f32.mrb[0].mxu0
      %771 = vmatprep.mubr.bf16.mxu0 %v577
      %772 = vmatmul.mubr.bf16.gmra.mrb[0].mxu0 %v576
      %v773 = vpop.f32.mrb[0].mxu0
      %v774 = vadd.f32 %v618, %v773
      %v775 = vpop.f32.mrb[0].mxu0
      %v776 = vpop.f32.mrb[0].mxu0
      %v777 = vadd.f32 %v618, %v776
      %v778 = vpop.f32.mrb[0].mxu0
      %779 = vmatprep.mubr.bf16.mxu0 %v579
      %780 = vmatmul.mubr.bf16.gmra.mrb[0].mxu0 %v578
      %v781 = vpop.f32.mrb[0].mxu0
      %v782 = vadd.f32 %v618, %v781
      %v783 = vpop.f32.mrb[0].mxu0
      %v784 = vpop.f32.mrb[0].mxu0
      %v785 = vadd.f32 %v618, %v784
      %v786 = vpop.f32.mrb[0].mxu0
      %787 = vmatprep.mubr.bf16.mxu0 %v581
      %788 = vmatmul.mubr.bf16.gmra.mrb[0].mxu0 %v580
      %v789 = vpop.f32.mrb[0].mxu0
      %v790 = vadd.f32 %v618, %v789
      %v791 = vpop.f32.mrb[0].mxu0
      %v792 = vpop.f32.mrb[0].mxu0
      %v793 = vadd.f32 %v618, %v792
      %v794 = vpop.f32.mrb[0].mxu0
      %795 = vmatprep.mubr.bf16.mxu0 %v583
      %796 = vmatmul.mubr.bf16.gmra.mrb[0].mxu0 %v582
      %v797 = vpop.f32.mrb[0].mxu0
      %v798 = vadd.f32 %v618, %v797
      %v799 = vpop.f32.mrb[0].mxu0
      %v800 = vpop.f32.mrb[0].mxu0
      %v801 = vadd.f32 %v618, %v800
      %v802 = vpop.f32.mrb[0].mxu0
      %803 = vmatprep.mubr.bf16.mxu0 %v585
      %804 = vmatmul.mubr.bf16.gmra.mrb[0].mxu0 %v584
      %v805 = vpop.f32.mrb[0].mxu0
      %v806 = vadd.f32 %v618, %v805
      %v807 = vpop.f32.mrb[0].mxu0
      %v808 = vpop.f32.mrb[0].mxu0
      %v809 = vadd.f32 %v618, %v808
      %v810 = vpop.f32.mrb[0].mxu0
      %811 = vdwg.mxu0
      %vm812 = vcmp.gt.f32.partialorder %v750, 0.0
      %vm813 = vcmp.gt.f32.partialorder %v753, 0.0
      %vm814 = vcmp.gt.f32.partialorder %v758, 0.0
      %vm815 = vcmp.gt.f32.partialorder %v761, 0.0
      %vm816 = vcmp.gt.f32.partialorder %v766, 0.0
      %vm817 = vcmp.gt.f32.partialorder %v769, 0.0
      %vm818 = vcmp.gt.f32.partialorder %v774, 0.0
      %vm819 = vcmp.gt.f32.partialorder %v777, 0.0
      %vm820 = vcmp.gt.f32.partialorder %v782, 0.0
      %vm821 = vcmp.gt.f32.partialorder %v785, 0.0
      %vm822 = vcmp.gt.f32.partialorder %v790, 0.0
      %vm823 = vcmp.gt.f32.partialorder %v793, 0.0
      %vm824 = vcmp.gt.f32.partialorder %v798, 0.0
      %vm825 = vcmp.gt.f32.partialorder %v801, 0.0
      %vm826 = vcmp.gt.f32.partialorder %v806, 0.0
      %vm827 = vcmp.gt.f32.partialorder %v809, 0.0
      %v828 = vmul.f32 %v750, 0.01
      %v829 = vmul.f32 %v753, 0.01
      %v830 = vmul.f32 %v758, 0.01
      %v831 = vmul.f32 %v761, 0.01
      %v832 = vmul.f32 %v766, 0.01
      %v833 = vmul.f32 %v769, 0.01
      %v834 = vmul.f32 %v774, 0.01
      %v835 = vmul.f32 %v777, 0.01
      %v836 = vmul.f32 %v782, 0.01
      %v837 = vmul.f32 %v785, 0.01
      %v838 = vmul.f32 %v790, 0.01
      %v839 = vmul.f32 %v793, 0.01
      %v840 = vmul.f32 %v798, 0.01
      %v841 = vmul.f32 %v801, 0.01
      %v842 = vmul.f32 %v806, 0.01
      %v843 = vmul.f32 %v809, 0.01
      %v844 = vsel %vm812, %v750, %v828
      %v845 = vsel %vm813, %v753, %v829
      %v846 = vsel %vm814, %v758, %v830
      %v847 = vsel %vm815, %v761, %v831
      %v848 = vsel %vm816, %v766, %v832
      %v849 = vsel %vm817, %v769, %v833
      %v850 = vsel %vm818, %v774, %v834
      %v851 = vsel %vm819, %v777, %v835
      %v852 = vsel %vm820, %v782, %v836
      %v853 = vsel %vm821, %v785, %v837
      %v854 = vsel %vm822, %v790, %v838
      %v855 = vsel %vm823, %v793, %v839
      %v856 = vsel %vm824, %v798, %v840
      %v857 = vsel %vm825, %v801, %v841
      %v858 = vsel %vm826, %v806, %v842
      %v859 = vsel %vm827, %v809, %v843
      %v860 = vpack.c.bf16 %v845, %v844
      %v861 = vpack.c.bf16 %v847, %v846
      %v862 = vpack.c.bf16 %v849, %v848
      %v863 = vpack.c.bf16 %v851, %v850
      %v864 = vpack.c.bf16 %v853, %v852
      %v865 = vpack.c.bf16 %v855, %v854
      %v866 = vpack.c.bf16 %v857, %v856
      %v867 = vpack.c.bf16 %v859, %v858
      %v868 = vld [vmem:[%s3] sm:$0xf]
      %v869 = vld [vmem:[%s3 + $0x4] sm:$0xf]
      %v870 = vld [vmem:[%s3 + $0x8] sm:$0xf]
      %v871 = vld [vmem:[%s3 + $0xc] sm:$0xf]
      %v872 = vld [vmem:[%s3 + $0x10] sm:$0xf]
      %v873 = vld [vmem:[%s3 + $0x14] sm:$0xf]
      %v874 = vld [vmem:[%s3 + $0x18] sm:$0xf]
      %v875 = vld [vmem:[%s3 + $0x1c] sm:$0xf]
      %v876 = vld [vmem:[%s3 + $0x20] sm:$0xf]
      %v877 = vld [vmem:[%s3 + $0x24] sm:$0xf]
      %v878 = vld [vmem:[%s3 + $0x28] sm:$0xf]
      %v879 = vld [vmem:[%s3 + $0x2c] sm:$0xf]
      %v880 = vld [vmem:[%s3 + $0x30] sm:$0xf]
      %v881 = vld [vmem:[%s3 + $0x34] sm:$0xf]
      %v882 = vld [vmem:[%s3 + $0x38] sm:$0xf]
      %v883 = vld [vmem:[%s3 + $0x3c] sm:$0xf]
      %v884 = vld [vmem:[%s4 + $0x2] ss:$0 sm:$0xff]
      %v901 = vunpack.c.l.b16 %v868
      %v902 = vunpack.c.l.b16 %v869
      %v903 = vunpack.c.l.b16 %v870
      %v904 = vunpack.c.l.b16 %v871
      %v905 = vunpack.c.l.b16 %v872
      %v906 = vunpack.c.l.b16 %v873
      %v907 = vunpack.c.l.b16 %v874
      %v908 = vunpack.c.l.b16 %v875
      %v909 = vunpack.c.l.b16 %v876
      %v910 = vunpack.c.l.b16 %v877
      %v911 = vunpack.c.l.b16 %v878
      %v912 = vunpack.c.l.b16 %v879
      %v913 = vunpack.c.l.b16 %v880
      %v914 = vunpack.c.l.b16 %v881
      %v915 = vunpack.c.l.b16 %v882
      %v916 = vunpack.c.l.b16 %v883
      %v917 = vpack.c.b16 %v902, %v901
      %v918 = vpack.c.b16 %v904, %v903
      %v919 = vpack.c.b16 %v906, %v905
      %v920 = vpack.c.b16 %v908, %v907
      %v921 = vpack.c.b16 %v910, %v909
      %v922 = vpack.c.b16 %v912, %v911
      %v923 = vpack.c.b16 %v914, %v913
      %v924 = vpack.c.b16 %v916, %v915
      %933 = vmatprep.subr.bf16.mxu0 0
      %934 = vmatpush1.bf16.msra.mxu0 %v917
      %935 = vmatprep.subr.bf16.mxu0 0
      %936 = vmatpush1.bf16.msra.mxu0 %v918
      %937 = vmatprep.subr.bf16.mxu0 0
      %938 = vmatpush1.bf16.msra.mxu0 %v919
      %939 = vmatprep.subr.bf16.mxu0 0
      %940 = vmatpush1.bf16.msra.mxu0 %v920
      %941 = vmatprep.subr.bf16.mxu0 0
      %942 = vmatpush1.bf16.msra.mxu0 %v921
      %943 = vmatprep.subr.bf16.mxu0 0
      %944 = vmatpush1.bf16.msra.mxu0 %v922
      %945 = vmatprep.subr.bf16.mxu0 0
      %946 = vmatpush1.bf16.msra.mxu0 %v923
      %947 = vmatprep.subr.bf16.mxu0 0
      %948 = vmatpush1.bf16.msra.mxu0 %v924
      %949 = vmatprep.subr.bf16.mxu0 0
      %950 = vmatpush1.bf16.msra.mxu0 0
      %951 = vmatprep.subr.bf16.mxu0 0
      %952 = vmatpush1.bf16.msra.mxu0 0
      %953 = vmatprep.subr.bf16.mxu0 0
      %954 = vmatpush1.bf16.msra.mxu0 0
      %955 = vmatprep.subr.bf16.mxu0 0
      %956 = vmatpush1.bf16.msra.mxu0 0
      %957 = vmatprep.subr.bf16.mxu0 0
      %958 = vmatpush1.bf16.msra.mxu0 0
      %959 = vmatprep.subr.bf16.mxu0 0
      %960 = vmatpush1.bf16.msra.mxu0 0
      %961 = vmatprep.subr.bf16.mxu0 0
      %962 = vmatpush1.bf16.msra.mxu0 0
      %963 = vmatprep.subr.bf16.mxu0 0
      %964 = vmatpush1.bf16.msra.mxu0 0
      %965 = vmatprep.mubr.bf16.mxu0 0
      %966 = vmatmul.mubr.bf16.gmra.mrb[0].mxu0 %v860
      %v967 = vpop.f32.mrb[0].mxu0
      %v968 = vadd.f32 %v884, %v967
      %v969 = vpop.f32.mrb[0].mxu0
      %v970 = vpop.f32.mrb[0].mxu0
      %v971 = vadd.f32 %v884, %v970
      %v972 = vpop.f32.mrb[0].mxu0
      %973 = vmatprep.mubr.bf16.mxu0 0
      %974 = vmatmul.mubr.bf16.gmra.mrb[0].mxu0 %v861
      %v975 = vpop.f32.mrb[0].mxu0
      %v976 = vadd.f32 %v884, %v975
      %v977 = vpop.f32.mrb[0].mxu0
      %v978 = vpop.f32.mrb[0].mxu0
      %v979 = vadd.f32 %v884, %v978
      %v980 = vpop.f32.mrb[0].mxu0
      %981 = vmatprep.mubr.bf16.mxu0 0
      %982 = vmatmul.mubr.bf16.gmra.mrb[0].mxu0 %v862
      %v983 = vpop.f32.mrb[0].mxu0
      %v984 = vadd.f32 %v884, %v983
      %v985 = vpop.f32.mrb[0].mxu0
      %v986 = vpop.f32.mrb[0].mxu0
      %v987 = vadd.f32 %v884, %v986
      %v988 = vpop.f32.mrb[0].mxu0
      %989 = vmatprep.mubr.bf16.mxu0 0
      %990 = vmatmul.mubr.bf16.gmra.mrb[0].mxu0 %v863
      %v991 = vpop.f32.mrb[0].mxu0
      %v992 = vadd.f32 %v884, %v991
      %v993 = vpop.f32.mrb[0].mxu0
      %v994 = vpop.f32.mrb[0].mxu0
      %v995 = vadd.f32 %v884, %v994
      %v996 = vpop.f32.mrb[0].mxu0
      %997 = vmatprep.mubr.bf16.mxu0 0
      %998 = vmatmul.mubr.bf16.gmra.mrb[0].mxu0 %v864
      %v999 = vpop.f32.mrb[0].mxu0
      %v1000 = vadd.f32 %v884, %v999
      %v1001 = vpop.f32.mrb[0].mxu0
      %v1002 = vpop.f32.mrb[0].mxu0
      %v1003 = vadd.f32 %v884, %v1002
      %v1004 = vpop.f32.mrb[0].mxu0
      %1005 = vmatprep.mubr.bf16.mxu0 0
      %1006 = vmatmul.mubr.bf16.gmra.mrb[0].mxu0 %v865
      %v1007 = vpop.f32.mrb[0].mxu0
      %v1008 = vadd.f32 %v884, %v1007
      %v1009 = vpop.f32.mrb[0].mxu0
      %v1010 = vpop.f32.mrb[0].mxu0
      %v1011 = vadd.f32 %v884, %v1010
      %v1012 = vpop.f32.mrb[0].mxu0
      %1013 = vmatprep.mubr.bf16.mxu0 0
      %1014 = vmatmul.mubr.bf16.gmra.mrb[0].mxu0 %v866
      %v1015 = vpop.f32.mrb[0].mxu0
      %v1016 = vadd.f32 %v884, %v1015
      %v1017 = vpop.f32.mrb[0].mxu0
      %v1018 = vpop.f32.mrb[0].mxu0
      %v1019 = vadd.f32 %v884, %v1018
      %v1020 = vpop.f32.mrb[0].mxu0
      %1021 = vmatprep.mubr.bf16.mxu0 0
      %1022 = vmatmul.mubr.bf16.gmra.mrb[0].mxu0 %v867
      %v1023 = vpop.f32.mrb[0].mxu0
      %v1024 = vadd.f32 %v884, %v1023
      %v1025 = vpop.f32.mrb[0].mxu0
      %v1026 = vpop.f32.mrb[0].mxu0
      %v1027 = vadd.f32 %v884, %v1026
      %v1028 = vpop.f32.mrb[0].mxu0
      %1029 = vdwg.mxu0
      %vm1030 = vcmp.gt.f32.partialorder %v968, 0.0
      %vm1031 = vcmp.gt.f32.partialorder %v971, 0.0
      %vm1032 = vcmp.gt.f32.partialorder %v976, 0.0
      %vm1033 = vcmp.gt.f32.partialorder %v979, 0.0
      %vm1034 = vcmp.gt.f32.partialorder %v984, 0.0
      %vm1035 = vcmp.gt.f32.partialorder %v987, 0.0
      %vm1036 = vcmp.gt.f32.partialorder %v992, 0.0
      %vm1037 = vcmp.gt.f32.partialorder %v995, 0.0
      %vm1038 = vcmp.gt.f32.partialorder %v1000, 0.0
      %vm1039 = vcmp.gt.f32.partialorder %v1003, 0.0
      %vm1040 = vcmp.gt.f32.partialorder %v1008, 0.0
      %vm1041 = vcmp.gt.f32.partialorder %v1011, 0.0
      %vm1042 = vcmp.gt.f32.partialorder %v1016, 0.0
      %vm1043 = vcmp.gt.f32.partialorder %v1019, 0.0
      %vm1044 = vcmp.gt.f32.partialorder %v1024, 0.0
      %vm1045 = vcmp.gt.f32.partialorder %v1027, 0.0
      %v1046 = vmul.f32 %v968, 0.01
      %v1047 = vmul.f32 %v971, 0.01
      %v1048 = vmul.f32 %v976, 0.01
      %v1049 = vmul.f32 %v979, 0.01
      %v1050 = vmul.f32 %v984, 0.01
      %v1051 = vmul.f32 %v987, 0.01
      %v1052 = vmul.f32 %v992, 0.01
      %v1053 = vmul.f32 %v995, 0.01
      %v1054 = vmul.f32 %v1000, 0.01
      %v1055 = vmul.f32 %v1003, 0.01
      %v1056 = vmul.f32 %v1008, 0.01
      %v1057 = vmul.f32 %v1011, 0.01
      %v1058 = vmul.f32 %v1016, 0.01
      %v1059 = vmul.f32 %v1019, 0.01
      %v1060 = vmul.f32 %v1024, 0.01
      %v1061 = vmul.f32 %v1027, 0.01
      %v1062 = vsel %vm1030, %v968, %v1046
      %v1063 = vsel %vm1031, %v971, %v1047
      %v1064 = vsel %vm1032, %v976, %v1048
      %v1065 = vsel %vm1033, %v979, %v1049
      %v1066 = vsel %vm1034, %v984, %v1050
      %v1067 = vsel %vm1035, %v987, %v1051
      %v1068 = vsel %vm1036, %v992, %v1052
      %v1069 = vsel %vm1037, %v995, %v1053
      %v1070 = vsel %vm1038, %v1000, %v1054
      %v1071 = vsel %vm1039, %v1003, %v1055
      %v1072 = vsel %vm1040, %v1008, %v1056
      %v1073 = vsel %vm1041, %v1011, %v1057
      %v1074 = vsel %vm1042, %v1016, %v1058
      %v1075 = vsel %vm1043, %v1019, %v1059
      %v1076 = vsel %vm1044, %v1024, %v1060
      %v1077 = vsel %vm1045, %v1027, %v1061
      %v1078 = vpack.c.bf16 %v1063, %v1062
      %v1079 = vpack.c.bf16 %v1065, %v1064
      %v1080 = vpack.c.bf16 %v1067, %v1066
      %v1081 = vpack.c.bf16 %v1069, %v1068
      %v1082 = vpack.c.bf16 %v1071, %v1070
      %v1083 = vpack.c.bf16 %v1073, %v1072
      %v1084 = vpack.c.bf16 %v1075, %v1074
      %v1085 = vpack.c.bf16 %v1077, %v1076
      %s1086 = scalar_lea.vmem %s3, 64
      %v1087 = vld [vmem:[%s1086] sm:$0xf]
      %v1088 = vld [vmem:[%s1086 + $0x4] sm:$0xf]
      %v1089 = vld [vmem:[%s1086 + $0x8] sm:$0xf]
      %v1090 = vld [vmem:[%s1086 + $0xc] sm:$0xf]
      %v1091 = vld [vmem:[%s1086 + $0x10] sm:$0xf]
      %v1092 = vld [vmem:[%s1086 + $0x14] sm:$0xf]
      %v1093 = vld [vmem:[%s1086 + $0x18] sm:$0xf]
      %v1094 = vld [vmem:[%s1086 + $0x1c] sm:$0xf]
      %v1095 = vld [vmem:[%s1086 + $0x20] sm:$0xf]
      %v1096 = vld [vmem:[%s1086 + $0x24] sm:$0xf]
      %v1097 = vld [vmem:[%s1086 + $0x28] sm:$0xf]
      %v1098 = vld [vmem:[%s1086 + $0x2c] sm:$0xf]
      %v1099 = vld [vmem:[%s1086 + $0x30] sm:$0xf]
      %v1100 = vld [vmem:[%s1086 + $0x34] sm:$0xf]
      %v1101 = vld [vmem:[%s1086 + $0x38] sm:$0xf]
      %v1102 = vld [vmem:[%s1086 + $0x3c] sm:$0xf]
      %v1103 = vld [vmem:[%s4 + $0x3] ss:$0 sm:$0xff]
      %v1120 = vunpack.c.l.b16 %v1087
      %v1121 = vunpack.c.l.b16 %v1088
      %v1122 = vunpack.c.l.b16 %v1089
      %v1123 = vunpack.c.l.b16 %v1090
      %v1124 = vunpack.c.l.b16 %v1091
      %v1125 = vunpack.c.l.b16 %v1092
      %v1126 = vunpack.c.l.b16 %v1093
      %v1127 = vunpack.c.l.b16 %v1094
      %v1128 = vunpack.c.l.b16 %v1095
      %v1129 = vunpack.c.l.b16 %v1096
      %v1130 = vunpack.c.l.b16 %v1097
      %v1131 = vunpack.c.l.b16 %v1098
      %v1132 = vunpack.c.l.b16 %v1099
      %v1133 = vunpack.c.l.b16 %v1100
      %v1134 = vunpack.c.l.b16 %v1101
      %v1135 = vunpack.c.l.b16 %v1102
      %v1136 = vpack.c.b16 %v1121, %v1120
      %v1137 = vpack.c.b16 %v1123, %v1122
      %v1138 = vpack.c.b16 %v1125, %v1124
      %v1139 = vpack.c.b16 %v1127, %v1126
      %v1140 = vpack.c.b16 %v1129, %v1128
      %v1141 = vpack.c.b16 %v1131, %v1130
      %v1142 = vpack.c.b16 %v1133, %v1132
      %v1143 = vpack.c.b16 %v1135, %v1134
      %1152 = vmatprep.subr.bf16.mxu0 0
      %1153 = vmatpush1.bf16.msra.mxu0 %v1136
      %1154 = vmatprep.subr.bf16.mxu0 0
      %1155 = vmatpush1.bf16.msra.mxu0 %v1137
      %1156 = vmatprep.subr.bf16.mxu0 0
      %1157 = vmatpush1.bf16.msra.mxu0 %v1138
      %1158 = vmatprep.subr.bf16.mxu0 0
      %1159 = vmatpush1.bf16.msra.mxu0 %v1139
      %1160 = vmatprep.subr.bf16.mxu0 0
      %1161 = vmatpush1.bf16.msra.mxu0 %v1140
      %1162 = vmatprep.subr.bf16.mxu0 0
      %1163 = vmatpush1.bf16.msra.mxu0 %v1141
      %1164 = vmatprep.subr.bf16.mxu0 0
      %1165 = vmatpush1.bf16.msra.mxu0 %v1142
      %1166 = vmatprep.subr.bf16.mxu0 0
      %1167 = vmatpush1.bf16.msra.mxu0 %v1143
      %1168 = vmatprep.subr.bf16.mxu0 0
      %1169 = vmatpush1.bf16.msra.mxu0 0
      %1170 = vmatprep.subr.bf16.mxu0 0
      %1171 = vmatpush1.bf16.msra.mxu0 0
      %1172 = vmatprep.subr.bf16.mxu0 0
      %1173 = vmatpush1.bf16.msra.mxu0 0
      %1174 = vmatprep.subr.bf16.mxu0 0
      %1175 = vmatpush1.bf16.msra.mxu0 0
      %1176 = vmatprep.subr.bf16.mxu0 0
      %1177 = vmatpush1.bf16.msra.mxu0 0
      %1178 = vmatprep.subr.bf16.mxu0 0
      %1179 = vmatpush1.bf16.msra.mxu0 0
      %1180 = vmatprep.subr.bf16.mxu0 0
      %1181 = vmatpush1.bf16.msra.mxu0 0
      %1182 = vmatprep.subr.bf16.mxu0 0
      %1183 = vmatpush1.bf16.msra.mxu0 0
      %1184 = vmatprep.mubr.bf16.mxu0 0
      %1185 = vmatmul.mubr.bf16.gmra.mrb[0].mxu0 %v1078
      %v1186 = vpop.f32.mrb[0].mxu0
      %v1187 = vadd.f32 %v1103, %v1186
      %v1188 = vpop.f32.mrb[0].mxu0
      %v1189 = vpop.f32.mrb[0].mxu0
      %v1190 = vadd.f32 %v1103, %v1189
      %v1191 = vpop.f32.mrb[0].mxu0
      %1192 = vmatprep.mubr.bf16.mxu0 0
      %1193 = vmatmul.mubr.bf16.gmra.mrb[0].mxu0 %v1079
      %v1194 = vpop.f32.mrb[0].mxu0
      %v1195 = vadd.f32 %v1103, %v1194
      %v1196 = vpop.f32.mrb[0].mxu0
      %v1197 = vpop.f32.mrb[0].mxu0
      %v1198 = vadd.f32 %v1103, %v1197
      %v1199 = vpop.f32.mrb[0].mxu0
      %1200 = vmatprep.mubr.bf16.mxu0 0
      %1201 = vmatmul.mubr.bf16.gmra.mrb[0].mxu0 %v1080
      %v1202 = vpop.f32.mrb[0].mxu0
      %v1203 = vadd.f32 %v1103, %v1202
      %v1204 = vpop.f32.mrb[0].mxu0
      %v1205 = vpop.f32.mrb[0].mxu0
      %v1206 = vadd.f32 %v1103, %v1205
      %v1207 = vpop.f32.mrb[0].mxu0
      %1208 = vmatprep.mubr.bf16.mxu0 0
      %1209 = vmatmul.mubr.bf16.gmra.mrb[0].mxu0 %v1081
      %v1210 = vpop.f32.mrb[0].mxu0
      %v1211 = vadd.f32 %v1103, %v1210
      %v1212 = vpop.f32.mrb[0].mxu0
      %v1213 = vpop.f32.mrb[0].mxu0
      %v1214 = vadd.f32 %v1103, %v1213
      %v1215 = vpop.f32.mrb[0].mxu0
      %1216 = vmatprep.mubr.bf16.mxu0 0
      %1217 = vmatmul.mubr.bf16.gmra.mrb[0].mxu0 %v1082
      %v1218 = vpop.f32.mrb[0].mxu0
      %v1219 = vadd.f32 %v1103, %v1218
      %v1220 = vpop.f32.mrb[0].mxu0
      %v1221 = vpop.f32.mrb[0].mxu0
      %v1222 = vadd.f32 %v1103, %v1221
      %v1223 = vpop.f32.mrb[0].mxu0
      %1224 = vmatprep.mubr.bf16.mxu0 0
      %1225 = vmatmul.mubr.bf16.gmra.mrb[0].mxu0 %v1083
      %v1226 = vpop.f32.mrb[0].mxu0
      %v1227 = vadd.f32 %v1103, %v1226
      %v1228 = vpop.f32.mrb[0].mxu0
      %v1229 = vpop.f32.mrb[0].mxu0
      %v1230 = vadd.f32 %v1103, %v1229
      %v1231 = vpop.f32.mrb[0].mxu0
      %1232 = vmatprep.mubr.bf16.mxu0 0
      %1233 = vmatmul.mubr.bf16.gmra.mrb[0].mxu0 %v1084
      %v1234 = vpop.f32.mrb[0].mxu0
      %v1235 = vadd.f32 %v1103, %v1234
      %v1236 = vpop.f32.mrb[0].mxu0
      %v1237 = vpop.f32.mrb[0].mxu0
      %v1238 = vadd.f32 %v1103, %v1237
      %v1239 = vpop.f32.mrb[0].mxu0
      %1240 = vmatprep.mubr.bf16.mxu0 0
      %1241 = vmatmul.mubr.bf16.gmra.mrb[0].mxu0 %v1085
      %v1242 = vpop.f32.mrb[0].mxu0
      %v1243 = vadd.f32 %v1103, %v1242
      %v1244 = vpop.f32.mrb[0].mxu0
      %v1245 = vpop.f32.mrb[0].mxu0
      %v1246 = vadd.f32 %v1103, %v1245
      %v1247 = vpop.f32.mrb[0].mxu0
      %1248 = vdwg.mxu0
      %vm1249 = vcmp.gt.f32.partialorder %v1187, 0.0
      %vm1250 = vcmp.gt.f32.partialorder %v1190, 0.0
      %vm1251 = vcmp.gt.f32.partialorder %v1195, 0.0
      %vm1252 = vcmp.gt.f32.partialorder %v1198, 0.0
      %vm1253 = vcmp.gt.f32.partialorder %v1203, 0.0
      %vm1254 = vcmp.gt.f32.partialorder %v1206, 0.0
      %vm1255 = vcmp.gt.f32.partialorder %v1211, 0.0
      %vm1256 = vcmp.gt.f32.partialorder %v1214, 0.0
      %vm1257 = vcmp.gt.f32.partialorder %v1219, 0.0
      %vm1258 = vcmp.gt.f32.partialorder %v1222, 0.0
      %vm1259 = vcmp.gt.f32.partialorder %v1227, 0.0
      %vm1260 = vcmp.gt.f32.partialorder %v1230, 0.0
      %vm1261 = vcmp.gt.f32.partialorder %v1235, 0.0
      %vm1262 = vcmp.gt.f32.partialorder %v1238, 0.0
      %vm1263 = vcmp.gt.f32.partialorder %v1243, 0.0
      %vm1264 = vcmp.gt.f32.partialorder %v1246, 0.0
      %v1265 = vmul.f32 %v1187, 0.01
      %v1266 = vmul.f32 %v1190, 0.01
      %v1267 = vmul.f32 %v1195, 0.01
      %v1268 = vmul.f32 %v1198, 0.01
      %v1269 = vmul.f32 %v1203, 0.01
      %v1270 = vmul.f32 %v1206, 0.01
      %v1271 = vmul.f32 %v1211, 0.01
      %v1272 = vmul.f32 %v1214, 0.01
      %v1273 = vmul.f32 %v1219, 0.01
      %v1274 = vmul.f32 %v1222, 0.01
      %v1275 = vmul.f32 %v1227, 0.01
      %v1276 = vmul.f32 %v1230, 0.01
      %v1277 = vmul.f32 %v1235, 0.01
      %v1278 = vmul.f32 %v1238, 0.01
      %v1279 = vmul.f32 %v1243, 0.01
      %v1280 = vmul.f32 %v1246, 0.01
      %v1281 = vsel %vm1249, %v1187, %v1265
      %v1282 = vsel %vm1250, %v1190, %v1266
      %v1283 = vsel %vm1251, %v1195, %v1267
      %v1284 = vsel %vm1252, %v1198, %v1268
      %v1285 = vsel %vm1253, %v1203, %v1269
      %v1286 = vsel %vm1254, %v1206, %v1270
      %v1287 = vsel %vm1255, %v1211, %v1271
      %v1288 = vsel %vm1256, %v1214, %v1272
      %v1289 = vsel %vm1257, %v1219, %v1273
      %v1290 = vsel %vm1258, %v1222, %v1274
      %v1291 = vsel %vm1259, %v1227, %v1275
      %v1292 = vsel %vm1260, %v1230, %v1276
      %v1293 = vsel %vm1261, %v1235, %v1277
      %v1294 = vsel %vm1262, %v1238, %v1278
      %v1295 = vsel %vm1263, %v1243, %v1279
      %v1296 = vsel %vm1264, %v1246, %v1280
      %v1297 = vpack.c.bf16 %v1282, %v1281
      %v1298 = vpack.c.bf16 %v1284, %v1283
      %v1299 = vpack.c.bf16 %v1286, %v1285
      %v1300 = vpack.c.bf16 %v1288, %v1287
      %v1301 = vpack.c.bf16 %v1290, %v1289
      %v1302 = vpack.c.bf16 %v1292, %v1291
      %v1303 = vpack.c.bf16 %v1294, %v1293
      %v1304 = vpack.c.bf16 %v1296, %v1295
      %s1305 = scalar_lea.vmem %s3, 128
      %v1306 = vld [vmem:[%s1305] sm:$0xf]
      %v1307 = vld [vmem:[%s1305 + $0x4] sm:$0xf]
      %v1308 = vld [vmem:[%s1305 + $0x8] sm:$0xf]
      %v1309 = vld [vmem:[%s1305 + $0xc] sm:$0xf]
      %v1310 = vld [vmem:[%s1305 + $0x10] sm:$0xf]
      %v1311 = vld [vmem:[%s1305 + $0x14] sm:$0xf]
      %v1312 = vld [vmem:[%s1305 + $0x18] sm:$0xf]
      %v1313 = vld [vmem:[%s1305 + $0x1c] sm:$0xf]
      %v1314 = vld [vmem:[%s1305 + $0x20] sm:$0xf]
      %v1315 = vld [vmem:[%s1305 + $0x24] sm:$0xf]
      %v1316 = vld [vmem:[%s1305 + $0x28] sm:$0xf]
      %v1317 = vld [vmem:[%s1305 + $0x2c] sm:$0xf]
      %v1318 = vld [vmem:[%s1305 + $0x30] sm:$0xf]
      %v1319 = vld [vmem:[%s1305 + $0x34] sm:$0xf]
      %v1320 = vld [vmem:[%s1305 + $0x38] sm:$0xf]
      %v1321 = vld [vmem:[%s1305 + $0x3c] sm:$0xf]
      %v1322 = vld [vmem:[%s4 + $0x4] ss:$0 sm:$0xff]
      %v1339 = vunpack.c.l.b16 %v1306
      %v1340 = vunpack.c.l.b16 %v1307
      %v1341 = vunpack.c.l.b16 %v1308
      %v1342 = vunpack.c.l.b16 %v1309
      %v1343 = vunpack.c.l.b16 %v1310
      %v1344 = vunpack.c.l.b16 %v1311
      %v1345 = vunpack.c.l.b16 %v1312
      %v1346 = vunpack.c.l.b16 %v1313
      %v1347 = vunpack.c.l.b16 %v1314
      %v1348 = vunpack.c.l.b16 %v1315
      %v1349 = vunpack.c.l.b16 %v1316
      %v1350 = vunpack.c.l.b16 %v1317
      %v1351 = vunpack.c.l.b16 %v1318
      %v1352 = vunpack.c.l.b16 %v1319
      %v1353 = vunpack.c.l.b16 %v1320
      %v1354 = vunpack.c.l.b16 %v1321
      %v1355 = vpack.c.b16 %v1340, %v1339
      %v1356 = vpack.c.b16 %v1342, %v1341
      %v1357 = vpack.c.b16 %v1344, %v1343
      %v1358 = vpack.c.b16 %v1346, %v1345
      %v1359 = vpack.c.b16 %v1348, %v1347
      %v1360 = vpack.c.b16 %v1350, %v1349
      %v1361 = vpack.c.b16 %v1352, %v1351
      %v1362 = vpack.c.b16 %v1354, %v1353
      %1371 = vmatprep.subr.bf16.mxu0 0
      %1372 = vmatpush1.bf16.msra.mxu0 %v1355
      %1373 = vmatprep.subr.bf16.mxu0 0
      %1374 = vmatpush1.bf16.msra.mxu0 %v1356
      %1375 = vmatprep.subr.bf16.mxu0 0
      %1376 = vmatpush1.bf16.msra.mxu0 %v1357
      %1377 = vmatprep.subr.bf16.mxu0 0
      %1378 = vmatpush1.bf16.msra.mxu0 %v1358
      %1379 = vmatprep.subr.bf16.mxu0 0
      %1380 = vmatpush1.bf16.msra.mxu0 %v1359
      %1381 = vmatprep.subr.bf16.mxu0 0
      %1382 = vmatpush1.bf16.msra.mxu0 %v1360
      %1383 = vmatprep.subr.bf16.mxu0 0
      %1384 = vmatpush1.bf16.msra.mxu0 %v1361
      %1385 = vmatprep.subr.bf16.mxu0 0
      %1386 = vmatpush1.bf16.msra.mxu0 %v1362
      %1387 = vmatprep.subr.bf16.mxu0 0
      %1388 = vmatpush1.bf16.msra.mxu0 0
      %1389 = vmatprep.subr.bf16.mxu0 0
      %1390 = vmatpush1.bf16.msra.mxu0 0
      %1391 = vmatprep.subr.bf16.mxu0 0
      %1392 = vmatpush1.bf16.msra.mxu0 0
      %1393 = vmatprep.subr.bf16.mxu0 0
      %1394 = vmatpush1.bf16.msra.mxu0 0
      %1395 = vmatprep.subr.bf16.mxu0 0
      %1396 = vmatpush1.bf16.msra.mxu0 0
      %1397 = vmatprep.subr.bf16.mxu0 0
      %1398 = vmatpush1.bf16.msra.mxu0 0
      %1399 = vmatprep.subr.bf16.mxu0 0
      %1400 = vmatpush1.bf16.msra.mxu0 0
      %1401 = vmatprep.subr.bf16.mxu0 0
      %1402 = vmatpush1.bf16.msra.mxu0 0
      %1403 = vmatprep.mubr.bf16.mxu0 0
      %1404 = vmatmul.mubr.bf16.gmra.mrb[0].mxu0 %v1297
      %v1405 = vpop.f32.mrb[0].mxu0
      %v1406 = vadd.f32 %v1322, %v1405
      %v1407 = vpop.f32.mrb[0].mxu0
      %v1408 = vpop.f32.mrb[0].mxu0
      %v1409 = vadd.f32 %v1322, %v1408
      %v1410 = vpop.f32.mrb[0].mxu0
      %1411 = vmatprep.mubr.bf16.mxu0 0
      %1412 = vmatmul.mubr.bf16.gmra.mrb[0].mxu0 %v1298
      %v1413 = vpop.f32.mrb[0].mxu0
      %v1414 = vadd.f32 %v1322, %v1413
      %v1415 = vpop.f32.mrb[0].mxu0
      %v1416 = vpop.f32.mrb[0].mxu0
      %v1417 = vadd.f32 %v1322, %v1416
      %v1418 = vpop.f32.mrb[0].mxu0
      %1419 = vmatprep.mubr.bf16.mxu0 0
      %1420 = vmatmul.mubr.bf16.gmra.mrb[0].mxu0 %v1299
      %v1421 = vpop.f32.mrb[0].mxu0
      %v1422 = vadd.f32 %v1322, %v1421
      %v1423 = vpop.f32.mrb[0].mxu0
      %v1424 = vpop.f32.mrb[0].mxu0
      %v1425 = vadd.f32 %v1322, %v1424
      %v1426 = vpop.f32.mrb[0].mxu0
      %1427 = vmatprep.mubr.bf16.mxu0 0
      %1428 = vmatmul.mubr.bf16.gmra.mrb[0].mxu0 %v1300
      %v1429 = vpop.f32.mrb[0].mxu0
      %v1430 = vadd.f32 %v1322, %v1429
      %v1431 = vpop.f32.mrb[0].mxu0
      %v1432 = vpop.f32.mrb[0].mxu0
      %v1433 = vadd.f32 %v1322, %v1432
      %v1434 = vpop.f32.mrb[0].mxu0
      %1435 = vmatprep.mubr.bf16.mxu0 0
      %1436 = vmatmul.mubr.bf16.gmra.mrb[0].mxu0 %v1301
      %v1437 = vpop.f32.mrb[0].mxu0
      %v1438 = vadd.f32 %v1322, %v1437
      %v1439 = vpop.f32.mrb[0].mxu0
      %v1440 = vpop.f32.mrb[0].mxu0
      %v1441 = vadd.f32 %v1322, %v1440
      %v1442 = vpop.f32.mrb[0].mxu0
      %1443 = vmatprep.mubr.bf16.mxu0 0
      %1444 = vmatmul.mubr.bf16.gmra.mrb[0].mxu0 %v1302
      %v1445 = vpop.f32.mrb[0].mxu0
      %v1446 = vadd.f32 %v1322, %v1445
      %v1447 = vpop.f32.mrb[0].mxu0
      %v1448 = vpop.f32.mrb[0].mxu0
      %v1449 = vadd.f32 %v1322, %v1448
      %v1450 = vpop.f32.mrb[0].mxu0
      %1451 = vmatprep.mubr.bf16.mxu0 0
      %1452 = vmatmul.mubr.bf16.gmra.mrb[0].mxu0 %v1303
      %v1453 = vpop.f32.mrb[0].mxu0
      %v1454 = vadd.f32 %v1322, %v1453
      %v1455 = vpop.f32.mrb[0].mxu0
      %v1456 = vpop.f32.mrb[0].mxu0
      %v1457 = vadd.f32 %v1322, %v1456
      %v1458 = vpop.f32.mrb[0].mxu0
      %1459 = vmatprep.mubr.bf16.mxu0 0
      %1460 = vmatmul.mubr.bf16.gmra.mrb[0].mxu0 %v1304
      %v1461 = vpop.f32.mrb[0].mxu0
      %v1462 = vadd.f32 %v1322, %v1461
      %v1463 = vpop.f32.mrb[0].mxu0
      %v1464 = vpop.f32.mrb[0].mxu0
      %v1465 = vadd.f32 %v1322, %v1464
      %v1466 = vpop.f32.mrb[0].mxu0
      %1467 = vdwg.mxu0
      %vm1468 = vcmp.gt.f32.partialorder %v1406, 0.0
      %vm1469 = vcmp.gt.f32.partialorder %v1409, 0.0
      %vm1470 = vcmp.gt.f32.partialorder %v1414, 0.0
      %vm1471 = vcmp.gt.f32.partialorder %v1417, 0.0
      %vm1472 = vcmp.gt.f32.partialorder %v1422, 0.0
      %vm1473 = vcmp.gt.f32.partialorder %v1425, 0.0
      %vm1474 = vcmp.gt.f32.partialorder %v1430, 0.0
      %vm1475 = vcmp.gt.f32.partialorder %v1433, 0.0
      %vm1476 = vcmp.gt.f32.partialorder %v1438, 0.0
      %vm1477 = vcmp.gt.f32.partialorder %v1441, 0.0
      %vm1478 = vcmp.gt.f32.partialorder %v1446, 0.0
      %vm1479 = vcmp.gt.f32.partialorder %v1449, 0.0
      %vm1480 = vcmp.gt.f32.partialorder %v1454, 0.0
      %vm1481 = vcmp.gt.f32.partialorder %v1457, 0.0
      %vm1482 = vcmp.gt.f32.partialorder %v1462, 0.0
      %vm1483 = vcmp.gt.f32.partialorder %v1465, 0.0
      %v1484 = vmul.f32 %v1406, 0.01
      %v1485 = vmul.f32 %v1409, 0.01
      %v1486 = vmul.f32 %v1414, 0.01
      %v1487 = vmul.f32 %v1417, 0.01
      %v1488 = vmul.f32 %v1422, 0.01
      %v1489 = vmul.f32 %v1425, 0.01
      %v1490 = vmul.f32 %v1430, 0.01
      %v1491 = vmul.f32 %v1433, 0.01
      %v1492 = vmul.f32 %v1438, 0.01
      %v1493 = vmul.f32 %v1441, 0.01
      %v1494 = vmul.f32 %v1446, 0.01
      %v1495 = vmul.f32 %v1449, 0.01
      %v1496 = vmul.f32 %v1454, 0.01
      %v1497 = vmul.f32 %v1457, 0.01
      %v1498 = vmul.f32 %v1462, 0.01
      %v1499 = vmul.f32 %v1465, 0.01
      %v1500 = vsel %vm1468, %v1406, %v1484
      %v1501 = vsel %vm1469, %v1409, %v1485
      %v1502 = vsel %vm1470, %v1414, %v1486
      %v1503 = vsel %vm1471, %v1417, %v1487
      %v1504 = vsel %vm1472, %v1422, %v1488
      %v1505 = vsel %vm1473, %v1425, %v1489
      %v1506 = vsel %vm1474, %v1430, %v1490
      %v1507 = vsel %vm1475, %v1433, %v1491
      %v1508 = vsel %vm1476, %v1438, %v1492
      %v1509 = vsel %vm1477, %v1441, %v1493
      %v1510 = vsel %vm1478, %v1446, %v1494
      %v1511 = vsel %vm1479, %v1449, %v1495
      %v1512 = vsel %vm1480, %v1454, %v1496
      %v1513 = vsel %vm1481, %v1457, %v1497
      %v1514 = vsel %vm1482, %v1462, %v1498
      %v1515 = vsel %vm1483, %v1465, %v1499
      %v1516 = vpack.c.bf16 %v1501, %v1500
      %v1517 = vpack.c.bf16 %v1503, %v1502
      %v1518 = vpack.c.bf16 %v1505, %v1504
      %v1519 = vpack.c.bf16 %v1507, %v1506
      %v1520 = vpack.c.bf16 %v1509, %v1508
      %v1521 = vpack.c.bf16 %v1511, %v1510
      %v1522 = vpack.c.bf16 %v1513, %v1512
      %v1523 = vpack.c.bf16 %v1515, %v1514
      %s1524 = scalar_lea.vmem %s3, 192
      %v1525 = vld [vmem:[%s1524] sm:$0xf]
      %v1526 = vld [vmem:[%s1524 + $0x4] sm:$0xf]
      %v1527 = vld [vmem:[%s1524 + $0x8] sm:$0xf]
      %v1528 = vld [vmem:[%s1524 + $0xc] sm:$0xf]
      %v1529 = vld [vmem:[%s1524 + $0x10] sm:$0xf]
      %v1530 = vld [vmem:[%s1524 + $0x14] sm:$0xf]
      %v1531 = vld [vmem:[%s1524 + $0x18] sm:$0xf]
      %v1532 = vld [vmem:[%s1524 + $0x1c] sm:$0xf]
      %v1533 = vld [vmem:[%s1524 + $0x20] sm:$0xf]
      %v1534 = vld [vmem:[%s1524 + $0x24] sm:$0xf]
      %v1535 = vld [vmem:[%s1524 + $0x28] sm:$0xf]
      %v1536 = vld [vmem:[%s1524 + $0x2c] sm:$0xf]
      %v1537 = vld [vmem:[%s1524 + $0x30] sm:$0xf]
      %v1538 = vld [vmem:[%s1524 + $0x34] sm:$0xf]
      %v1539 = vld [vmem:[%s1524 + $0x38] sm:$0xf]
      %v1540 = vld [vmem:[%s1524 + $0x3c] sm:$0xf]
      %v1541 = vld [vmem:[%s4 + $0x5] ss:$0 sm:$0xff]
      %v1558 = vunpack.c.l.b16 %v1525
      %v1559 = vunpack.c.l.b16 %v1526
      %v1560 = vunpack.c.l.b16 %v1527
      %v1561 = vunpack.c.l.b16 %v1528
      %v1562 = vunpack.c.l.b16 %v1529
      %v1563 = vunpack.c.l.b16 %v1530
      %v1564 = vunpack.c.l.b16 %v1531
      %v1565 = vunpack.c.l.b16 %v1532
      %v1566 = vunpack.c.l.b16 %v1533
      %v1567 = vunpack.c.l.b16 %v1534
      %v1568 = vunpack.c.l.b16 %v1535
      %v1569 = vunpack.c.l.b16 %v1536
      %v1570 = vunpack.c.l.b16 %v1537
      %v1571 = vunpack.c.l.b16 %v1538
      %v1572 = vunpack.c.l.b16 %v1539
      %v1573 = vunpack.c.l.b16 %v1540
      %v1574 = vpack.c.b16 %v1559, %v1558
      %v1575 = vpack.c.b16 %v1561, %v1560
      %v1576 = vpack.c.b16 %v1563, %v1562
      %v1577 = vpack.c.b16 %v1565, %v1564
      %v1578 = vpack.c.b16 %v1567, %v1566
      %v1579 = vpack.c.b16 %v1569, %v1568
      %v1580 = vpack.c.b16 %v1571, %v1570
      %v1581 = vpack.c.b16 %v1573, %v1572
      %1590 = vmatprep.subr.bf16.mxu0 0
      %1591 = vmatpush1.bf16.msra.mxu0 %v1574
      %1592 = vmatprep.subr.bf16.mxu0 0
      %1593 = vmatpush1.bf16.msra.mxu0 %v1575
      %1594 = vmatprep.subr.bf16.mxu0 0
      %1595 = vmatpush1.bf16.msra.mxu0 %v1576
      %1596 = vmatprep.subr.bf16.mxu0 0
      %1597 = vmatpush1.bf16.msra.mxu0 %v1577
      %1598 = vmatprep.subr.bf16.mxu0 0
      %1599 = vmatpush1.bf16.msra.mxu0 %v1578
      %1600 = vmatprep.subr.bf16.mxu0 0
      %1601 = vmatpush1.bf16.msra.mxu0 %v1579
      %1602 = vmatprep.subr.bf16.mxu0 0
      %1603 = vmatpush1.bf16.msra.mxu0 %v1580
      %1604 = vmatprep.subr.bf16.mxu0 0
      %1605 = vmatpush1.bf16.msra.mxu0 %v1581
      %1606 = vmatprep.subr.bf16.mxu0 0
      %1607 = vmatpush1.bf16.msra.mxu0 0
      %1608 = vmatprep.subr.bf16.mxu0 0
      %1609 = vmatpush1.bf16.msra.mxu0 0
      %1610 = vmatprep.subr.bf16.mxu0 0
      %1611 = vmatpush1.bf16.msra.mxu0 0
      %1612 = vmatprep.subr.bf16.mxu0 0
      %1613 = vmatpush1.bf16.msra.mxu0 0
      %1614 = vmatprep.subr.bf16.mxu0 0
      %1615 = vmatpush1.bf16.msra.mxu0 0
      %1616 = vmatprep.subr.bf16.mxu0 0
      %1617 = vmatpush1.bf16.msra.mxu0 0
      %1618 = vmatprep.subr.bf16.mxu0 0
      %1619 = vmatpush1.bf16.msra.mxu0 0
      %1620 = vmatprep.subr.bf16.mxu0 0
      %1621 = vmatpush1.bf16.msra.mxu0 0
      %1622 = vmatprep.mubr.bf16.mxu0 0
      %1623 = vmatmul.mubr.bf16.gmra.mrb[0].mxu0 %v1516
      %v1624 = vpop.f32.mrb[0].mxu0
      %v1625 = vadd.f32 %v1541, %v1624
      %v1626 = vpop.f32.mrb[0].mxu0
      %v1627 = vpop.f32.mrb[0].mxu0
      %v1628 = vadd.f32 %v1541, %v1627
      %v1629 = vpop.f32.mrb[0].mxu0
      %1630 = vmatprep.mubr.bf16.mxu0 0
      %1631 = vmatmul.mubr.bf16.gmra.mrb[0].mxu0 %v1517
      %v1632 = vpop.f32.mrb[0].mxu0
      %v1633 = vadd.f32 %v1541, %v1632
      %v1634 = vpop.f32.mrb[0].mxu0
      %v1635 = vpop.f32.mrb[0].mxu0
      %v1636 = vadd.f32 %v1541, %v1635
      %v1637 = vpop.f32.mrb[0].mxu0
      %1638 = vmatprep.mubr.bf16.mxu0 0
      %1639 = vmatmul.mubr.bf16.gmra.mrb[0].mxu0 %v1518
      %v1640 = vpop.f32.mrb[0].mxu0
      %v1641 = vadd.f32 %v1541, %v1640
      %v1642 = vpop.f32.mrb[0].mxu0
      %v1643 = vpop.f32.mrb[0].mxu0
      %v1644 = vadd.f32 %v1541, %v1643
      %v1645 = vpop.f32.mrb[0].mxu0
      %1646 = vmatprep.mubr.bf16.mxu0 0
      %1647 = vmatmul.mubr.bf16.gmra.mrb[0].mxu0 %v1519
      %v1648 = vpop.f32.mrb[0].mxu0
      %v1649 = vadd.f32 %v1541, %v1648
      %v1650 = vpop.f32.mrb[0].mxu0
      %v1651 = vpop.f32.mrb[0].mxu0
      %v1652 = vadd.f32 %v1541, %v1651
      %v1653 = vpop.f32.mrb[0].mxu0
      %1654 = vmatprep.mubr.bf16.mxu0 0
      %1655 = vmatmul.mubr.bf16.gmra.mrb[0].mxu0 %v1520
      %v1656 = vpop.f32.mrb[0].mxu0
      %v1657 = vadd.f32 %v1541, %v1656
      %v1658 = vpop.f32.mrb[0].mxu0
      %v1659 = vpop.f32.mrb[0].mxu0
      %v1660 = vadd.f32 %v1541, %v1659
      %v1661 = vpop.f32.mrb[0].mxu0
      %1662 = vmatprep.mubr.bf16.mxu0 0
      %1663 = vmatmul.mubr.bf16.gmra.mrb[0].mxu0 %v1521
      %v1664 = vpop.f32.mrb[0].mxu0
      %v1665 = vadd.f32 %v1541, %v1664
      %v1666 = vpop.f32.mrb[0].mxu0
      %v1667 = vpop.f32.mrb[0].mxu0
      %v1668 = vadd.f32 %v1541, %v1667
      %v1669 = vpop.f32.mrb[0].mxu0
      %1670 = vmatprep.mubr.bf16.mxu0 0
      %1671 = vmatmul.mubr.bf16.gmra.mrb[0].mxu0 %v1522
      %v1672 = vpop.f32.mrb[0].mxu0
      %v1673 = vadd.f32 %v1541, %v1672
      %v1674 = vpop.f32.mrb[0].mxu0
      %v1675 = vpop.f32.mrb[0].mxu0
      %v1676 = vadd.f32 %v1541, %v1675
      %v1677 = vpop.f32.mrb[0].mxu0
      %1678 = vmatprep.mubr.bf16.mxu0 0
      %1679 = vmatmul.mubr.bf16.gmra.mrb[0].mxu0 %v1523
      %v1680 = vpop.f32.mrb[0].mxu0
      %v1681 = vadd.f32 %v1541, %v1680
      %v1682 = vpop.f32.mrb[0].mxu0
      %v1683 = vpop.f32.mrb[0].mxu0
      %v1684 = vadd.f32 %v1541, %v1683
      %v1685 = vpop.f32.mrb[0].mxu0
      %1686 = vdwg.mxu0
      %vm1687 = vcmp.gt.f32.partialorder %v1625, 0.0
      %vm1688 = vcmp.gt.f32.partialorder %v1628, 0.0
      %vm1689 = vcmp.gt.f32.partialorder %v1633, 0.0
      %vm1690 = vcmp.gt.f32.partialorder %v1636, 0.0
      %vm1691 = vcmp.gt.f32.partialorder %v1641, 0.0
      %vm1692 = vcmp.gt.f32.partialorder %v1644, 0.0
      %vm1693 = vcmp.gt.f32.partialorder %v1649, 0.0
      %vm1694 = vcmp.gt.f32.partialorder %v1652, 0.0
      %vm1695 = vcmp.gt.f32.partialorder %v1657, 0.0
      %vm1696 = vcmp.gt.f32.partialorder %v1660, 0.0
      %vm1697 = vcmp.gt.f32.partialorder %v1665, 0.0
      %vm1698 = vcmp.gt.f32.partialorder %v1668, 0.0
      %vm1699 = vcmp.gt.f32.partialorder %v1673, 0.0
      %vm1700 = vcmp.gt.f32.partialorder %v1676, 0.0
      %vm1701 = vcmp.gt.f32.partialorder %v1681, 0.0
      %vm1702 = vcmp.gt.f32.partialorder %v1684, 0.0
      %v1703 = vmul.f32 %v1625, 0.01
      %v1704 = vmul.f32 %v1628, 0.01
      %v1705 = vmul.f32 %v1633, 0.01
      %v1706 = vmul.f32 %v1636, 0.01
      %v1707 = vmul.f32 %v1641, 0.01
      %v1708 = vmul.f32 %v1644, 0.01
      %v1709 = vmul.f32 %v1649, 0.01
      %v1710 = vmul.f32 %v1652, 0.01
      %v1711 = vmul.f32 %v1657, 0.01
      %v1712 = vmul.f32 %v1660, 0.01
      %v1713 = vmul.f32 %v1665, 0.01
      %v1714 = vmul.f32 %v1668, 0.01
      %v1715 = vmul.f32 %v1673, 0.01
      %v1716 = vmul.f32 %v1676, 0.01
      %v1717 = vmul.f32 %v1681, 0.01
      %v1718 = vmul.f32 %v1684, 0.01
      %v1719 = vsel %vm1687, %v1625, %v1703
      %v1720 = vsel %vm1688, %v1628, %v1704
      %v1721 = vsel %vm1689, %v1633, %v1705
      %v1722 = vsel %vm1690, %v1636, %v1706
      %v1723 = vsel %vm1691, %v1641, %v1707
      %v1724 = vsel %vm1692, %v1644, %v1708
      %v1725 = vsel %vm1693, %v1649, %v1709
      %v1726 = vsel %vm1694, %v1652, %v1710
      %v1727 = vsel %vm1695, %v1657, %v1711
      %v1728 = vsel %vm1696, %v1660, %v1712
      %v1729 = vsel %vm1697, %v1665, %v1713
      %v1730 = vsel %vm1698, %v1668, %v1714
      %v1731 = vsel %vm1699, %v1673, %v1715
      %v1732 = vsel %vm1700, %v1676, %v1716
      %v1733 = vsel %vm1701, %v1681, %v1717
      %v1734 = vsel %vm1702, %v1684, %v1718
      %1735 = vst [vmem:[%s226] sm:$0xff] %v1719
      %1736 = vst [vmem:[%s226 + $0x8] sm:$0xff] %v1720
      %1737 = vst [vmem:[%s226 + $0x10] sm:$0xff] %v1721
      %1738 = vst [vmem:[%s226 + $0x18] sm:$0xff] %v1722
      %1739 = vst [vmem:[%s226 + $0x20] sm:$0xff] %v1723
      %1740 = vst [vmem:[%s226 + $0x28] sm:$0xff] %v1724
      %1741 = vst [vmem:[%s226 + $0x30] sm:$0xff] %v1725
      %1742 = vst [vmem:[%s226 + $0x38] sm:$0xff] %v1726
      %1743 = vst [vmem:[%s226 + $0x40] sm:$0xff] %v1727
      %1744 = vst [vmem:[%s226 + $0x48] sm:$0xff] %v1728
      %1745 = vst [vmem:[%s226 + $0x50] sm:$0xff] %v1729
      %1746 = vst [vmem:[%s226 + $0x58] sm:$0xff] %v1730
      %1747 = vst [vmem:[%s226 + $0x60] sm:$0xff] %v1731
      %1748 = vst [vmem:[%s226 + $0x68] sm:$0xff] %v1732
      %1749 = vst [vmem:[%s226 + $0x70] sm:$0xff] %v1733
      %1750 = vst [vmem:[%s226 + $0x78] sm:$0xff] %v1734
      %s1751 = smul.u32 16, %s16
      %p1752 = scmp.lt.s32.totalorder %s1751, 31
      %s1753 = scalar_select %p1752, %s1751, 31
      %s1754 = smul.addr %s1753, 8
      %s1755 = scalar_lea.vmem %s5, %s1754
      // Predicated region
      $region41: #{mlp_forward.1} parent=39 // pred_check
        %p1756 = pneg %p144
      $region42: #{mlp_forward.1} parent=39 // pred_check_branch
        %1758 = sbr.rel (%p1756) target = $region44
      $region43: #{mlp_forward.1} parent=39 // pred_region
        %s1759 = smul.u32 16, %s16
      $region44: #{mlp_forward.1} parent=39 // pred_fallthru
        _
    $region40: #{mlp_forward.1} parent=5 // pred_fallthru
      _
    %p1760 = scmp.le.s32.totalorder 2, %s11
    // Predicated region
    $region45: #{mlp_forward.1} parent=5 // pred_check
      %p1761 = pneg %p1760
    $region46: #{mlp_forward.1} parent=5 // pred_check_branch
      %1763 = sbr.rel (%p1761) target = $region48
    $region47: #{mlp_forward.1} parent=5 // pred_region
      %s1764 = ssub.s32 %s11, 2
      // Predicated region
      $region49: #{mlp_forward.1} parent=47 // pred_check
        %p1765 = pneg %p150
      $region50: #{mlp_forward.1} parent=47 // pred_check_branch
        %1767 = sbr.rel (%p1765) target = $region52
      $region51: #{mlp_forward.1} parent=47 // pred_region
        %s1768 = smul.u32 16, %s17
        %p1769 = scmp.lt.s32.totalorder %s1768, 31
        %s1770 = scalar_select %p1769, %s1768, 31
        %s1771 = smul.addr %s1770, 8
        %s1772 = scalar_lea.vmem %s5, %s1771
      $region52: #{mlp_forward.1} parent=47 // pred_fallthru
        _
    $region48: #{mlp_forward.1} parent=5 // pred_fallthru
      _
  $region6: #{mlp_forward.1} parent=0 // loop_footer
    %s15 = sadd.s32 1, %s11
  $region7: #{mlp_forward.1} parent=0 // loop_footer_branch
    %10 = sbr.rel target = $region3
  $region8: #{mlp_forward.1} parent=0 // loop_exit
    _

</llo_original>
